<compile_context>
chip_gen: v7x
topology: tpu7x:2x2x1
jax: 0.10.0
libtpu: 0.0.40
codegen_flags: <defaults>
</compile_context>

<pallas_src>
import functools

import jax
import jax.numpy as jnp
from jax import lax
from jax.experimental import pallas as pl
from jax.experimental.pallas import tpu as pltpu


def _round_up(v, m):
    return (v + m - 1) // m * m


def _vmem_limit_bytes():
    """Leave headroom vs the chip's VMEM: ~48 MiB on v7x (64 MiB total),
    ~96 MiB on v5e/v6e (128 MiB total)."""
    cap = 128 * 1024 * 1024
    try:
        cap = int(pltpu.get_tpu_info().vmem_capacity_bytes)
    except Exception:
        pass
    return max(16 * 1024 * 1024, min((cap * 3) // 4, 96 * 1024 * 1024))


def _recurrence(proj_ref, seq_ref, w_hh, *, T, bt, n_chains, write_seq, unrolled):
    """h_t = tanh(proj[t] + h_{t-1} @ w_hh), streamed through VMEM scratches.

    proj_ref: (T*bt, H) f32 scratch holding the hoisted input projection
              (t-major rows: row t*bt + j is batch element j at time t).
    seq_ref:  (T*bt, H) bf16 scratch; receives h_t (next layer's input) when
              write_seq.
    n_chains independent batch sub-chains are interleaved so the serial
    MXU->result-FIFO->EUP(tanh) latency of one chain hides under the other.
    Returns the final hidden state, (bt, H) f32.
    """
    chunk = bt // n_chains
    bf = jnp.bfloat16

    # Step 0: h_{-1} == 0, so the matmul is dead.
    hs = []
    for c in range(n_chains):
        o = c * chunk
        h = jnp.tanh(proj_ref[pl.ds(o, chunk), :])
        if write_seq:
            seq_ref[pl.ds(o, chunk), :] = h.astype(bf)
        hs.append(h)
    hs = tuple(hs)

    def step(t, hs):
        new = []
        for c in range(n_chains):
            o = t * bt + c * chunk
            if not isinstance(o, int):
                o = pl.multiple_of(o, 8)            # bt, chunk are multiples of 8
            h = jnp.tanh(proj_ref[pl.ds(o, chunk), :]
                         + jnp.dot(hs[c].astype(bf), w_hh,
                                   preferred_element_type=jnp.float32))
            new.append(h)
        if write_seq:
            for c in range(n_chains):
                o = t * bt + c * chunk
                if not isinstance(o, int):
                    o = pl.multiple_of(o, 8)
                seq_ref[pl.ds(o, chunk), :] = new[c].astype(bf)
        return tuple(new)

    if unrolled:
        # Short static T: full unroll gives the LLO scheduler cross-step
        # visibility; only the chain carries stay live in vregs.
        for t in range(1, T):
            hs = step(t, hs)
    else:
        # Long sequences: modest unroll avoids instruction/live-range blowup.
        hs = lax.fori_loop(1, T, step, hs, unroll=2)

    if n_chains == 1:
        return hs[0]
    return jnp.concatenate(hs, axis=0)              # (bt, H)


def rnn_linear_kernel(x_ref, wih0_ref, w_ihr_ref, w_hh_ref, b_ref,
                      w_lin_ref, b_lin_ref, hid_ref, pred_ref,
                      proj_ref, seq_ref, *, T, n_chains, unrolled):
    """One grid step handles one batch tile end-to-end.

    x_ref:      (1, T*bt, 1)   time-major column of the scalar series for this tile
    wih0_ref:   (1, H)         layer-0 input->hidden weight row (f32)
    w_ihr_ref:  (max(L-1,1),H,H) layers>=1 input->hidden, (in,out), bf16
    w_hh_ref:   (L, H, H)      hidden->hidden, (in,out), bf16
    b_ref:      (L, 1, H)      b_ih + b_hh per layer (f32)
    w_lin_ref:  (L*H, O_pad)   Linear weight, (in,out), bf16, zero-padded lanes
    b_lin_ref:  (1, O_pad)     Linear bias (f32), zero-padded lanes
    hid_ref:    (bt, L*H)      out: lane-dense final hidden states (layer-major)
    pred_ref:   (bt, O_pad)    out: Linear head (lane-padded)
    proj_ref:   (T*bt, H) f32  scratch: hoisted input projection
    seq_ref:    (T*bt, H) bf16 scratch: this layer's hidden sequence
    """
    bt = hid_ref.shape[0]
    L = w_hh_ref.shape[0]
    bf = jnp.bfloat16

    x_col = x_ref[0]                                 # (T*bt, 1) f32, t-major
    wih0 = wih0_ref[...]                             # (1, H) f32

    finals = []
    for l in range(L):                               # static, small layer count
        b_l = b_ref[l]                               # (1, H) f32
        if l == 0:
            # Scalar input: one fused broadcast multiply-add for every timestep,
            # already in the t-major layout deeper layers use.
            proj_ref[...] = x_col * wih0 + b_l
        else:
            # Hoisted input projection: one bf16 MXU matmul covering all T steps,
            # bias folded in outside the recurrence, streamed into VMEM.
            proj_ref[...] = (jnp.dot(seq_ref[...], w_ihr_ref[l - 1],
                                     preferred_element_type=jnp.float32) + b_l)

        finals.append(_recurrence(proj_ref, seq_ref, w_hh_ref[l],
                                  T=T, bt=bt, n_chains=n_chains,
                                  write_seq=(l < L - 1), unrolled=unrolled))

    # Consolidated epilogue: one lane-dense store of all layers' finals and one
    # (bt, L*H) x (L*H, O_pad) matmul for the Linear head (unmasked 128-lane store).
    hcat = finals[0] if L == 1 else jnp.concatenate(finals, axis=-1)   # (bt, L*H)
    hid_ref[...] = hcat
    pred_ref[...] = (jnp.dot(hcat.astype(bf), w_lin_ref[...],
                             preferred_element_type=jnp.float32)
                     + b_lin_ref[...])


def rnn_linear_forward(x, kernel_params, *, batch_tile=None):
    """x: (B, 1, T) NCW input like the PyTorch module. Returns (pred, hidden)."""
    (wih0_row, w_ih_rest, w_hh_t, b_sum, w_lin_pad, b_lin_pad, out_dim) = kernel_params
    B, C, T = x.shape
    assert C == 1
    L, H, _ = w_hh_t.shape
    O_pad = w_lin_pad.shape[1]

    # ---- batch tile selection (always sublane-aligned; padding, never ignored) --
    if batch_tile is not None:
        bt = max(8, _round_up(int(batch_tile), 8))
    elif B >= 256:
        bt = _round_up(pl.cdiv(B, 2), 8)     # >=2 grid steps: v7x dual-TensorCore
    else:
        bt = _round_up(B, 8)                 # one coarse step (v5e/v6e: 1 TC)
    if bt >= 16:
        bt = _round_up(bt, 16)               # enables the two-chain interleave
    # VMEM guard: keep the two (T*bt, H) scratches well under budget.
    bt_cap = max(8, ((16 * 1024 * 1024) // (6 * T * H)) // 8 * 8)
    bt = min(bt, bt_cap)

    num_bt = pl.cdiv(B, bt)
    B_pad = num_bt * bt
    n_chains = 2 if (bt % 16 == 0 and bt >= 16) else 1
    unrolled = T <= 32

    # ---- arrange x as per-tile time-major columns: (num_bt, T*bt, 1) ------------
    x_bt = x[:, 0, :].astype(jnp.float32)                      # (B, T)
    if B_pad != B:
        x_bt = jnp.pad(x_bt, ((0, B_pad - B), (0, 0)))
    x_tiles = (x_bt.reshape(num_bt, bt, T)
                    .transpose(0, 2, 1)                        # (num_bt, T, bt)
                    .reshape(num_bt, T * bt, 1))

    def full_spec(arr):
        nd = arr.ndim
        return pl.BlockSpec(arr.shape, lambda i, _nd=nd: (0,) * _nd)

    kernel = functools.partial(rnn_linear_kernel, T=T, n_chains=n_chains,
                               unrolled=unrolled)

    hid, pred = pl.pallas_call(
        kernel,
        out_shape=(jax.ShapeDtypeStruct((B_pad, L * H), jnp.float32),
                   jax.ShapeDtypeStruct((B_pad, O_pad), jnp.float32)),
        grid_spec=pltpu.PrefetchScalarGridSpec(
            num_scalar_prefetch=0,
            grid=(num_bt,),
            in_specs=[pl.BlockSpec((1, T * bt, 1), lambda i: (i, 0, 0)),
                      full_spec(wih0_row),
                      full_spec(w_ih_rest),
                      full_spec(w_hh_t),
                      full_spec(b_sum),
                      full_spec(w_lin_pad),
                      full_spec(b_lin_pad)],
            out_specs=[pl.BlockSpec((bt, L * H), lambda i: (i, 0)),
                       pl.BlockSpec((bt, O_pad), lambda i: (i, 0))],
            scratch_shapes=[pltpu.VMEM((T * bt, H), jnp.float32),
                            pltpu.VMEM((T * bt, H), jnp.bfloat16)]),
        compiler_params=pltpu.CompilerParams(
            dimension_semantics=("parallel",),
            vmem_limit_bytes=_vmem_limit_bytes()),
    )(x_tiles, wih0_row, w_ih_rest, w_hh_t, b_sum, w_lin_pad, b_lin_pad)

    pred = pred[:B, :out_dim]                        # drop batch / lane padding
    hidden = hid[:B].reshape(B, L, H)                # PyTorch (B, L, H), free reshape
    return pred, hidden


def init_raw_params(key, hidden_size, n_layers, output_size):
    """PyTorch-style uniform(-1/sqrt(H), 1/sqrt(H)) init for nn.RNN + Linear."""
    H, L, O = hidden_size, n_layers, output_size
    bound = 1.0 / (H ** 0.5)
    keys = jax.random.split(key, 4 * L + 2)

    def uni(k, shape, b):
        return jax.random.uniform(k, shape, jnp.float32, -b, b)

    w_ih, w_hh, b_ih, b_hh = [], [], [], []
    for l in range(L):
        in_dim = 1 if l == 0 else H
        w_ih.append(uni(keys[4 * l + 0], (H, in_dim), bound))
        w_hh.append(uni(keys[4 * l + 1], (H, H), bound))
        b_ih.append(uni(keys[4 * l + 2], (H,), bound))
        b_hh.append(uni(keys[4 * l + 3], (H,), bound))
    lin_bound = 1.0 / ((L * H) ** 0.5)
    W_lin = uni(keys[-2], (O, L * H), lin_bound)
    b_lin = uni(keys[-1], (O,), lin_bound)
    return w_ih, w_hh, b_ih, b_hh, W_lin, b_lin


def pack_params_for_kernel(raw):
    """Pre-transpose to (in, out); bf16 MXU operands; lane-pad the Linear head."""
    w_ih, w_hh, b_ih, b_hh, W_lin, b_lin = raw
    L = len(w_hh)
    H = w_hh[0].shape[0]
    O = W_lin.shape[0]
    bf = jnp.bfloat16

    wih0_row = w_ih[0][:, 0][None, :].astype(jnp.float32)              # (1, H)
    if L > 1:
        w_ih_rest = jnp.stack([w_ih[l].T for l in range(1, L)]).astype(bf)
    else:
        w_ih_rest = jnp.zeros((1, H, H), bf)                           # unused
    w_hh_t = jnp.stack([w.T for w in w_hh]).astype(bf)                 # (L,H,H)
    b_sum = jnp.stack([(b_ih[l] + b_hh[l])[None, :]
                       for l in range(L)]).astype(jnp.float32)         # (L,1,H)

    O_pad = _round_up(max(O, 1), 128)
    w_lin_pad = jnp.zeros((L * H, O_pad), bf).at[:, :O].set(W_lin.T.astype(bf))
    b_lin_pad = jnp.zeros((1, O_pad), jnp.float32).at[0, :O].set(
        b_lin.astype(jnp.float32))
    return (wih0_row, w_ih_rest, w_hh_t, b_sum, w_lin_pad, b_lin_pad, O)


def rnn_linear_reference(x, raw):
    """Pure-JAX f32 replica of the PyTorch forward (identity preprocess)."""
    w_ih, w_hh, b_ih, b_hh, W_lin, b_lin = raw
    B, _, T = x.shape
    L = len(w_ih)
    H = w_hh[0].shape[0]
    seq = jnp.transpose(x, (2, 0, 1)).astype(jnp.float32)              # (T,B,1)
    finals = []
    for l in range(L):
        h = jnp.zeros((B, H), jnp.float32)
        outs = []
        for t in range(T):
            h = jnp.tanh(seq[t] @ w_ih[l].T + b_ih[l] + h @ w_hh[l].T + b_hh[l])
            outs.append(h)
        seq = jnp.stack(outs, axis=0)
        finals.append(h)
    hidden = jnp.stack(finals, axis=1)                                 # (B,L,H)
    pred = hidden.reshape(B, L * H) @ W_lin.T + b_lin
    return pred, hidden


def rnn_linear_reference_bf16(x, raw):
    """Replica mirroring the kernel's precision (bf16 MXU operands, f32 acc)."""
    w_ih, w_hh, b_ih, b_hh, W_lin, b_lin = raw
    B, _, T = x.shape
    L = len(w_ih)
    bf = jnp.bfloat16
    x_tm = jnp.transpose(x[:, 0, :].astype(jnp.float32))               # (T, B)
    wih0 = w_ih[0][:, 0][None, :]                                      # (1, H)
    finals, seq_bf = [], None
    for l in range(L):
        b = (b_ih[l] + b_hh[l])[None, :]
        if l == 0:
            proj = x_tm.reshape(T * B, 1) * wih0 + b                   # (T*B, H)
        else:
            proj = jnp.dot(seq_bf, w_ih[l].T.astype(bf),
                           preferred_element_type=jnp.float32) + b
        whh_bf = w_hh[l].T.astype(bf)
        h = jnp.tanh(proj[0:B])
        outs = [h]
        for t in range(1, T):
            h = jnp.tanh(proj[t * B:(t + 1) * B]
                         + jnp.dot(h.astype(bf), whh_bf,
                                   preferred_element_type=jnp.float32))
            outs.append(h)
        finals.append(h)
        if l < L - 1:
            seq_bf = jnp.concatenate(outs, axis=0).astype(bf)
    hidden = jnp.stack(finals, axis=1)                                 # (B,L,H)
    hcat = jnp.concatenate(finals, axis=-1).astype(bf)
    pred = jnp.dot(hcat, W_lin.T.astype(bf),
                   preferred_element_type=jnp.float32) + b_lin[None, :]
    return pred, hidden


if __name__ == "__main__":
    def check(B, T, hidden_size, n_layers, output_size, batch_tile=None,
              seed=0, check_f32=True):
        key = jax.random.PRNGKey(seed)
        kx, kp = jax.random.split(key)
        x = jax.random.normal(kx, (B, 1, T), jnp.float32)   # NCW, C=1 series
        raw = init_raw_params(kp, hidden_size, n_layers, output_size)
        kparams = pack_params_for_kernel(raw)

        pred, hidden = rnn_linear_forward(x, kparams, batch_tile=batch_tile)
        pred = jax.block_until_ready(pred)
        hidden = jax.block_until_ready(hidden)

        # 1) Tight check vs. a reference mirroring the kernel's bf16 precision.
        pred_bf, hidden_bf = rnn_linear_reference_bf16(x, raw)
        assert pred.shape == pred_bf.shape and hidden.shape == hidden_bf.shape
        assert jnp.allclose(pred, pred_bf, rtol=5e-3, atol=5e-3), \
            f"pred mismatch (bf16 ref) B={B} T={T}"
        assert jnp.allclose(hidden, hidden_bf, rtol=5e-3, atol=5e-3), \
            f"hidden mismatch (bf16 ref) B={B} T={T}"

        # 2) Semantics check vs. the pure-f32 PyTorch-equivalent forward.
        if check_f32:
            pred_ref, hidden_ref = rnn_linear_reference(x, raw)
            assert jnp.allclose(pred, pred_ref, rtol=5e-2, atol=5e-2), \
                f"pred mismatch (f32 ref) B={B} T={T}"
            assert jnp.allclose(hidden, hidden_ref, rtol=5e-2, atol=5e-2), \
                f"hidden mismatch (f32 ref) B={B} T={T}"

    # Primary small config from the module spec (B padded 2 -> 8, single tile).
    check(B=2, T=8, hidden_size=32, n_layers=2, output_size=5)
    # Multi-step batch grid + two interleaved half-chains + batch padding.
    check(B=40, T=8, hidden_size=32, n_layers=2, output_size=5,
          batch_tile=16, seed=1)
    # Long-sequence path (lax.fori_loop recurrence instead of full unroll).
    check(B=4, T=48, hidden_size=32, n_layers=2, output_size=5,
          seed=2, check_f32=False)

    print("KERNEL_OK")
</pallas_src>

<mosaic_0001>
module attributes {stable_mosaic.version = 11 : i64} {
  func.func @rnn_linear_kernel(%arg0: i32, %arg1: memref<1x64x1xf32, #tpu.memory_space<vmem>>, %arg2: memref<1x32xf32, #tpu.memory_space<vmem>>, %arg3: memref<1x32x32xbf16, #tpu.memory_space<vmem>>, %arg4: memref<2x32x32xbf16, #tpu.memory_space<vmem>>, %arg5: memref<2x1x32xf32, #tpu.memory_space<vmem>>, %arg6: memref<64x128xbf16, #tpu.memory_space<vmem>>, %arg7: memref<1x128xf32, #tpu.memory_space<vmem>>, %arg8: memref<8x64xf32, #tpu.memory_space<vmem>>, %arg9: memref<8x128xf32, #tpu.memory_space<vmem>>, %arg10: memref<64x32xf32, #tpu.memory_space<vmem>>, %arg11: memref<64x32xbf16, #tpu.memory_space<vmem>>) attributes {dimension_semantics = [#tpu.dimension_semantics<parallel>], iteration_bounds = array<i64: 1>, scalar_prefetch = 0 : i64, scratch_operands = 2 : i64, tpu.core_type = #tpu.core_type<tc>, window_params = [{transform_indices = @transform_0, window_bounds = array<i64: 1, 64, 1>}, {pipeline_mode = #tpu.pipeline_mode<synchronous>, transform_indices = @transform_1, window_bounds = array<i64: 1, 32>}, {pipeline_mode = #tpu.pipeline_mode<synchronous>, transform_indices = @transform_2, window_bounds = array<i64: 1, 32, 32>}, {pipeline_mode = #tpu.pipeline_mode<synchronous>, transform_indices = @transform_3, window_bounds = array<i64: 2, 32, 32>}, {pipeline_mode = #tpu.pipeline_mode<synchronous>, transform_indices = @transform_4, window_bounds = array<i64: 2, 1, 32>}, {pipeline_mode = #tpu.pipeline_mode<synchronous>, transform_indices = @transform_5, window_bounds = array<i64: 64, 128>}, {pipeline_mode = #tpu.pipeline_mode<synchronous>, transform_indices = @transform_6, window_bounds = array<i64: 1, 128>}, {transform_indices = @transform_7, window_bounds = array<i64: 8, 64>}, {transform_indices = @transform_8, window_bounds = array<i64: 8, 128>}]} {
    %c0 = arith.constant 0 : index
    %c0_0 = arith.constant 0 : index
    %c0_1 = arith.constant 0 : index
    %0 = vector.load %arg1[%c0, %c0_0, %c0_1] : memref<1x64x1xf32, #tpu.memory_space<vmem>>, vector<1x64x1xf32>
    %1 = vector.shape_cast %0 : vector<1x64x1xf32> to vector<64x1xf32>
    %c0_2 = arith.constant 0 : index
    %c0_3 = arith.constant 0 : index
    %2 = vector.load %arg2[%c0_2, %c0_3] : memref<1x32xf32, #tpu.memory_space<vmem>>, vector<1x32xf32>
    %c0_4 = arith.constant 0 : index
    %c0_5 = arith.constant 0 : index
    %c0_6 = arith.constant 0 : index
    %3 = vector.load %arg5[%c0_4, %c0_5, %c0_6] : memref<2x1x32xf32, #tpu.memory_space<vmem>>, vector<1x1x32xf32>
    %4 = vector.shape_cast %3 : vector<1x1x32xf32> to vector<1x32xf32>
    %5 = vector.broadcast %1 : vector<64x1xf32> to vector<64x32xf32>
    %6 = vector.broadcast %2 : vector<1x32xf32> to vector<64x32xf32>
    %7 = arith.mulf %5, %6 : vector<64x32xf32>
    %8 = vector.broadcast %4 : vector<1x32xf32> to vector<64x32xf32>
    %9 = arith.addf %7, %8 : vector<64x32xf32>
    %c0_7 = arith.constant 0 : index
    %c0_8 = arith.constant 0 : index
    %10 = vector.load %arg10[%c0_7, %c0_8] : memref<64x32xf32, #tpu.memory_space<vmem>>, vector<64x32xf32>
    tpu.vector_store %arg10[%c0_7, %c0_8], %9 {strides = array<i32>} : memref<64x32xf32, #tpu.memory_space<vmem>>, vector<64x32xf32>,
    %c0_9 = arith.constant 0 : index
    %c0_10 = arith.constant 0 : index
    %c0_11 = arith.constant 0 : index
    %11 = vector.load %arg4[%c0_9, %c0_10, %c0_11] : memref<2x32x32xbf16, #tpu.memory_space<vmem>>, vector<1x32x32xbf16>
    %12 = vector.shape_cast %11 : vector<1x32x32xbf16> to vector<32x32xbf16>
    %c0_12 = arith.constant 0 : index
    %c0_13 = arith.constant 0 : index
    %13 = vector.load %arg10[%c0_12, %c0_13] : memref<64x32xf32, #tpu.memory_space<vmem>>, vector<8x32xf32>
    %14 = math.tanh %13 : vector<8x32xf32>
    %15 = arith.truncf %14 : vector<8x32xf32> to vector<8x32xbf16>
    %c0_14 = arith.constant 0 : index
    %c0_15 = arith.constant 0 : index
    %16 = vector.load %arg11[%c0_14, %c0_15] : memref<64x32xbf16, #tpu.memory_space<vmem>>, vector<8x32xbf16>
    tpu.vector_store %arg11[%c0_14, %c0_15], %15 {strides = array<i32>} : memref<64x32xbf16, #tpu.memory_space<vmem>>, vector<8x32xbf16>,
    %c8 = arith.constant 8 : index
    %c0_16 = arith.constant 0 : index
    %17 = vector.load %arg10[%c8, %c0_16] : memref<64x32xf32, #tpu.memory_space<vmem>>, vector<8x32xf32>
    %18 = arith.truncf %14 : vector<8x32xf32> to vector<8x32xbf16>
    %cst = arith.constant dense<0.000000e+00> : vector<8x32xf32>
    %19 = tpu.matmul %18, %12, %cst {dimension_numbers = #tpu.dot_dimension_numbers<[1], [0], [0], [1], [0, 0, 1, 1], [], []>} : vector<8x32xbf16>, vector<32x32xbf16>, vector<8x32xf32> -> vector<8x32xf32>
    %20 = arith.addf %17, %19 : vector<8x32xf32>
    %21 = math.tanh %20 : vector<8x32xf32>
    %22 = arith.truncf %21 : vector<8x32xf32> to vector<8x32xbf16>
    %c8_17 = arith.constant 8 : index
    %c0_18 = arith.constant 0 : index
    %23 = vector.load %arg11[%c8_17, %c0_18] : memref<64x32xbf16, #tpu.memory_space<vmem>>, vector<8x32xbf16>
    tpu.vector_store %arg11[%c8_17, %c0_18], %22 {strides = array<i32>} : memref<64x32xbf16, #tpu.memory_space<vmem>>, vector<8x32xbf16>,
    %c16 = arith.constant 16 : index
    %c0_19 = arith.constant 0 : index
    %24 = vector.load %arg10[%c16, %c0_19] : memref<64x32xf32, #tpu.memory_space<vmem>>, vector<8x32xf32>
    %25 = arith.truncf %21 : vector<8x32xf32> to vector<8x32xbf16>
    %cst_20 = arith.constant dense<0.000000e+00> : vector<8x32xf32>
    %26 = tpu.matmul %25, %12, %cst_20 {dimension_numbers = #tpu.dot_dimension_numbers<[1], [0], [0], [1], [0, 0, 1, 1], [], []>} : vector<8x32xbf16>, vector<32x32xbf16>, vector<8x32xf32> -> vector<8x32xf32>
    %27 = arith.addf %24, %26 : vector<8x32xf32>
    %28 = math.tanh %27 : vector<8x32xf32>
    %29 = arith.truncf %28 : vector<8x32xf32> to vector<8x32xbf16>
    %c16_21 = arith.constant 16 : index
    %c0_22 = arith.constant 0 : index
    %30 = vector.load %arg11[%c16_21, %c0_22] : memref<64x32xbf16, #tpu.memory_space<vmem>>, vector<8x32xbf16>
    tpu.vector_store %arg11[%c16_21, %c0_22], %29 {strides = array<i32>} : memref<64x32xbf16, #tpu.memory_space<vmem>>, vector<8x32xbf16>,
    %c24 = arith.constant 24 : index
    %c0_23 = arith.constant 0 : index
    %31 = vector.load %arg10[%c24, %c0_23] : memref<64x32xf32, #tpu.memory_space<vmem>>, vector<8x32xf32>
    %32 = arith.truncf %28 : vector<8x32xf32> to vector<8x32xbf16>
    %cst_24 = arith.constant dense<0.000000e+00> : vector<8x32xf32>
    %33 = tpu.matmul %32, %12, %cst_24 {dimension_numbers = #tpu.dot_dimension_numbers<[1], [0], [0], [1], [0, 0, 1, 1], [], []>} : vector<8x32xbf16>, vector<32x32xbf16>, vector<8x32xf32> -> vector<8x32xf32>
    %34 = arith.addf %31, %33 : vector<8x32xf32>
    %35 = math.tanh %34 : vector<8x32xf32>
    %36 = arith.truncf %35 : vector<8x32xf32> to vector<8x32xbf16>
    %c24_25 = arith.constant 24 : index
    %c0_26 = arith.constant 0 : index
    %37 = vector.load %arg11[%c24_25, %c0_26] : memref<64x32xbf16, #tpu.memory_space<vmem>>, vector<8x32xbf16>
    tpu.vector_store %arg11[%c24_25, %c0_26], %36 {strides = array<i32>} : memref<64x32xbf16, #tpu.memory_space<vmem>>, vector<8x32xbf16>,
    %c32 = arith.constant 32 : index
    %c0_27 = arith.constant 0 : index
    %38 = vector.load %arg10[%c32, %c0_27] : memref<64x32xf32, #tpu.memory_space<vmem>>, vector<8x32xf32>
    %39 = arith.truncf %35 : vector<8x32xf32> to vector<8x32xbf16>
    %cst_28 = arith.constant dense<0.000000e+00> : vector<8x32xf32>
    %40 = tpu.matmul %39, %12, %cst_28 {dimension_numbers = #tpu.dot_dimension_numbers<[1], [0], [0], [1], [0, 0, 1, 1], [], []>} : vector<8x32xbf16>, vector<32x32xbf16>, vector<8x32xf32> -> vector<8x32xf32>
    %41 = arith.addf %38, %40 : vector<8x32xf32>
    %42 = math.tanh %41 : vector<8x32xf32>
    %43 = arith.truncf %42 : vector<8x32xf32> to vector<8x32xbf16>
    %c32_29 = arith.constant 32 : index
    %c0_30 = arith.constant 0 : index
    %44 = vector.load %arg11[%c32_29, %c0_30] : memref<64x32xbf16, #tpu.memory_space<vmem>>, vector<8x32xbf16>
    tpu.vector_store %arg11[%c32_29, %c0_30], %43 {strides = array<i32>} : memref<64x32xbf16, #tpu.memory_space<vmem>>, vector<8x32xbf16>,
    %c40 = arith.constant 40 : index
    %c0_31 = arith.constant 0 : index
    %45 = vector.load %arg10[%c40, %c0_31] : memref<64x32xf32, #tpu.memory_space<vmem>>, vector<8x32xf32>
    %46 = arith.truncf %42 : vector<8x32xf32> to vector<8x32xbf16>
    %cst_32 = arith.constant dense<0.000000e+00> : vector<8x32xf32>
    %47 = tpu.matmul %46, %12, %cst_32 {dimension_numbers = #tpu.dot_dimension_numbers<[1], [0], [0], [1], [0, 0, 1, 1], [], []>} : vector<8x32xbf16>, vector<32x32xbf16>, vector<8x32xf32> -> vector<8x32xf32>
    %48 = arith.addf %45, %47 : vector<8x32xf32>
    %49 = math.tanh %48 : vector<8x32xf32>
    %50 = arith.truncf %49 : vector<8x32xf32> to vector<8x32xbf16>
    %c40_33 = arith.constant 40 : index
    %c0_34 = arith.constant 0 : index
    %51 = vector.load %arg11[%c40_33, %c0_34] : memref<64x32xbf16, #tpu.memory_space<vmem>>, vector<8x32xbf16>
    tpu.vector_store %arg11[%c40_33, %c0_34], %50 {strides = array<i32>} : memref<64x32xbf16, #tpu.memory_space<vmem>>, vector<8x32xbf16>,
    %c48 = arith.constant 48 : index
    %c0_35 = arith.constant 0 : index
    %52 = vector.load %arg10[%c48, %c0_35] : memref<64x32xf32, #tpu.memory_space<vmem>>, vector<8x32xf32>
    %53 = arith.truncf %49 : vector<8x32xf32> to vector<8x32xbf16>
    %cst_36 = arith.constant dense<0.000000e+00> : vector<8x32xf32>
    %54 = tpu.matmul %53, %12, %cst_36 {dimension_numbers = #tpu.dot_dimension_numbers<[1], [0], [0], [1], [0, 0, 1, 1], [], []>} : vector<8x32xbf16>, vector<32x32xbf16>, vector<8x32xf32> -> vector<8x32xf32>
    %55 = arith.addf %52, %54 : vector<8x32xf32>
    %56 = math.tanh %55 : vector<8x32xf32>
    %57 = arith.truncf %56 : vector<8x32xf32> to vector<8x32xbf16>
    %c48_37 = arith.constant 48 : index
    %c0_38 = arith.constant 0 : index
    %58 = vector.load %arg11[%c48_37, %c0_38] : memref<64x32xbf16, #tpu.memory_space<vmem>>, vector<8x32xbf16>
    tpu.vector_store %arg11[%c48_37, %c0_38], %57 {strides = array<i32>} : memref<64x32xbf16, #tpu.memory_space<vmem>>, vector<8x32xbf16>,
    %c56 = arith.constant 56 : index
    %c0_39 = arith.constant 0 : index
    %59 = vector.load %arg10[%c56, %c0_39] : memref<64x32xf32, #tpu.memory_space<vmem>>, vector<8x32xf32>
    %60 = arith.truncf %56 : vector<8x32xf32> to vector<8x32xbf16>
    %cst_40 = arith.constant dense<0.000000e+00> : vector<8x32xf32>
    %61 = tpu.matmul %60, %12, %cst_40 {dimension_numbers = #tpu.dot_dimension_numbers<[1], [0], [0], [1], [0, 0, 1, 1], [], []>} : vector<8x32xbf16>, vector<32x32xbf16>, vector<8x32xf32> -> vector<8x32xf32>
    %62 = arith.addf %59, %61 : vector<8x32xf32>
    %63 = math.tanh %62 : vector<8x32xf32>
    %64 = arith.truncf %63 : vector<8x32xf32> to vector<8x32xbf16>
    %c56_41 = arith.constant 56 : index
    %c0_42 = arith.constant 0 : index
    %65 = vector.load %arg11[%c56_41, %c0_42] : memref<64x32xbf16, #tpu.memory_space<vmem>>, vector<8x32xbf16>
    tpu.vector_store %arg11[%c56_41, %c0_42], %64 {strides = array<i32>} : memref<64x32xbf16, #tpu.memory_space<vmem>>, vector<8x32xbf16>,
    %c1 = arith.constant 1 : index
    %c0_43 = arith.constant 0 : index
    %c0_44 = arith.constant 0 : index
    %66 = vector.load %arg5[%c1, %c0_43, %c0_44] : memref<2x1x32xf32, #tpu.memory_space<vmem>>, vector<1x1x32xf32>
    %67 = vector.shape_cast %66 : vector<1x1x32xf32> to vector<1x32xf32>
    %c0_45 = arith.constant 0 : index
    %c0_46 = arith.constant 0 : index
    %68 = vector.load %arg11[%c0_45, %c0_46] : memref<64x32xbf16, #tpu.memory_space<vmem>>, vector<64x32xbf16>
    %c0_47 = arith.constant 0 : index
    %c0_48 = arith.constant 0 : index
    %c0_49 = arith.constant 0 : index
    %69 = vector.load %arg3[%c0_47, %c0_48, %c0_49] : memref<1x32x32xbf16, #tpu.memory_space<vmem>>, vector<1x32x32xbf16>
    %70 = vector.shape_cast %69 : vector<1x32x32xbf16> to vector<32x32xbf16>
    %cst_50 = arith.constant dense<0.000000e+00> : vector<64x32xf32>
    %71 = tpu.matmul %68, %70, %cst_50 {dimension_numbers = #tpu.dot_dimension_numbers<[1], [0], [0], [1], [0, 0, 1, 1], [], []>} : vector<64x32xbf16>, vector<32x32xbf16>, vector<64x32xf32> -> vector<64x32xf32>
    %72 = vector.broadcast %67 : vector<1x32xf32> to vector<64x32xf32>
    %73 = arith.addf %71, %72 : vector<64x32xf32>
    %c0_51 = arith.constant 0 : index
    %c0_52 = arith.constant 0 : index
    %74 = vector.load %arg10[%c0_51, %c0_52] : memref<64x32xf32, #tpu.memory_space<vmem>>, vector<64x32xf32>
    tpu.vector_store %arg10[%c0_51, %c0_52], %73 {strides = array<i32>} : memref<64x32xf32, #tpu.memory_space<vmem>>, vector<64x32xf32>,
    %c1_53 = arith.constant 1 : index
    %c0_54 = arith.constant 0 : index
    %c0_55 = arith.constant 0 : index
    %75 = vector.load %arg4[%c1_53, %c0_54, %c0_55] : memref<2x32x32xbf16, #tpu.memory_space<vmem>>, vector<1x32x32xbf16>
    %76 = vector.shape_cast %75 : vector<1x32x32xbf16> to vector<32x32xbf16>
    %c0_56 = arith.constant 0 : index
    %c0_57 = arith.constant 0 : index
    %77 = vector.load %arg10[%c0_56, %c0_57] : memref<64x32xf32, #tpu.memory_space<vmem>>, vector<8x32xf32>
    %78 = math.tanh %77 : vector<8x32xf32>
    %c8_58 = arith.constant 8 : index
    %c0_59 = arith.constant 0 : index
    %79 = vector.load %arg10[%c8_58, %c0_59] : memref<64x32xf32, #tpu.memory_space<vmem>>, vector<8x32xf32>
    %80 = arith.truncf %78 : vector<8x32xf32> to vector<8x32xbf16>
    %cst_60 = arith.constant dense<0.000000e+00> : vector<8x32xf32>
    %81 = tpu.matmul %80, %76, %cst_60 {dimension_numbers = #tpu.dot_dimension_numbers<[1], [0], [0], [1], [0, 0, 1, 1], [], []>} : vector<8x32xbf16>, vector<32x32xbf16>, vector<8x32xf32> -> vector<8x32xf32>
    %82 = arith.addf %79, %81 : vector<8x32xf32>
    %83 = math.tanh %82 : vector<8x32xf32>
    %c16_61 = arith.constant 16 : index
    %c0_62 = arith.constant 0 : index
    %84 = vector.load %arg10[%c16_61, %c0_62] : memref<64x32xf32, #tpu.memory_space<vmem>>, vector<8x32xf32>
    %85 = arith.truncf %83 : vector<8x32xf32> to vector<8x32xbf16>
    %cst_63 = arith.constant dense<0.000000e+00> : vector<8x32xf32>
    %86 = tpu.matmul %85, %76, %cst_63 {dimension_numbers = #tpu.dot_dimension_numbers<[1], [0], [0], [1], [0, 0, 1, 1], [], []>} : vector<8x32xbf16>, vector<32x32xbf16>, vector<8x32xf32> -> vector<8x32xf32>
    %87 = arith.addf %84, %86 : vector<8x32xf32>
    %88 = math.tanh %87 : vector<8x32xf32>
    %c24_64 = arith.constant 24 : index
    %c0_65 = arith.constant 0 : index
    %89 = vector.load %arg10[%c24_64, %c0_65] : memref<64x32xf32, #tpu.memory_space<vmem>>, vector<8x32xf32>
    %90 = arith.truncf %88 : vector<8x32xf32> to vector<8x32xbf16>
    %cst_66 = arith.constant dense<0.000000e+00> : vector<8x32xf32>
    %91 = tpu.matmul %90, %76, %cst_66 {dimension_numbers = #tpu.dot_dimension_numbers<[1], [0], [0], [1], [0, 0, 1, 1], [], []>} : vector<8x32xbf16>, vector<32x32xbf16>, vector<8x32xf32> -> vector<8x32xf32>
    %92 = arith.addf %89, %91 : vector<8x32xf32>
    %93 = math.tanh %92 : vector<8x32xf32>
    %c32_67 = arith.constant 32 : index
    %c0_68 = arith.constant 0 : index
    %94 = vector.load %arg10[%c32_67, %c0_68] : memref<64x32xf32, #tpu.memory_space<vmem>>, vector<8x32xf32>
    %95 = arith.truncf %93 : vector<8x32xf32> to vector<8x32xbf16>
    %cst_69 = arith.constant dense<0.000000e+00> : vector<8x32xf32>
    %96 = tpu.matmul %95, %76, %cst_69 {dimension_numbers = #tpu.dot_dimension_numbers<[1], [0], [0], [1], [0, 0, 1, 1], [], []>} : vector<8x32xbf16>, vector<32x32xbf16>, vector<8x32xf32> -> vector<8x32xf32>
    %97 = arith.addf %94, %96 : vector<8x32xf32>
    %98 = math.tanh %97 : vector<8x32xf32>
    %c40_70 = arith.constant 40 : index
    %c0_71 = arith.constant 0 : index
    %99 = vector.load %arg10[%c40_70, %c0_71] : memref<64x32xf32, #tpu.memory_space<vmem>>, vector<8x32xf32>
    %100 = arith.truncf %98 : vector<8x32xf32> to vector<8x32xbf16>
    %cst_72 = arith.constant dense<0.000000e+00> : vector<8x32xf32>
    %101 = tpu.matmul %100, %76, %cst_72 {dimension_numbers = #tpu.dot_dimension_numbers<[1], [0], [0], [1], [0, 0, 1, 1], [], []>} : vector<8x32xbf16>, vector<32x32xbf16>, vector<8x32xf32> -> vector<8x32xf32>
    %102 = arith.addf %99, %101 : vector<8x32xf32>
    %103 = math.tanh %102 : vector<8x32xf32>
    %c48_73 = arith.constant 48 : index
    %c0_74 = arith.constant 0 : index
    %104 = vector.load %arg10[%c48_73, %c0_74] : memref<64x32xf32, #tpu.memory_space<vmem>>, vector<8x32xf32>
    %105 = arith.truncf %103 : vector<8x32xf32> to vector<8x32xbf16>
    %cst_75 = arith.constant dense<0.000000e+00> : vector<8x32xf32>
    %106 = tpu.matmul %105, %76, %cst_75 {dimension_numbers = #tpu.dot_dimension_numbers<[1], [0], [0], [1], [0, 0, 1, 1], [], []>} : vector<8x32xbf16>, vector<32x32xbf16>, vector<8x32xf32> -> vector<8x32xf32>
    %107 = arith.addf %104, %106 : vector<8x32xf32>
    %108 = math.tanh %107 : vector<8x32xf32>
    %c56_76 = arith.constant 56 : index
    %c0_77 = arith.constant 0 : index
    %109 = vector.load %arg10[%c56_76, %c0_77] : memref<64x32xf32, #tpu.memory_space<vmem>>, vector<8x32xf32>
    %110 = arith.truncf %108 : vector<8x32xf32> to vector<8x32xbf16>
    %cst_78 = arith.constant dense<0.000000e+00> : vector<8x32xf32>
    %111 = tpu.matmul %110, %76, %cst_78 {dimension_numbers = #tpu.dot_dimension_numbers<[1], [0], [0], [1], [0, 0, 1, 1], [], []>} : vector<8x32xbf16>, vector<32x32xbf16>, vector<8x32xf32> -> vector<8x32xf32>
    %112 = arith.addf %109, %111 : vector<8x32xf32>
    %113 = math.tanh %112 : vector<8x32xf32>
    %114 = tpu.concatenate %63, %113 in 1 : vector<8x32xf32>, vector<8x32xf32> -> vector<8x64xf32>
    %c0_79 = arith.constant 0 : index
    %c0_80 = arith.constant 0 : index
    %115 = vector.load %arg8[%c0_79, %c0_80] : memref<8x64xf32, #tpu.memory_space<vmem>>, vector<8x64xf32>
    tpu.vector_store %arg8[%c0_79, %c0_80], %114 {strides = array<i32>} : memref<8x64xf32, #tpu.memory_space<vmem>>, vector<8x64xf32>,
    %116 = arith.truncf %114 : vector<8x64xf32> to vector<8x64xbf16>
    %c0_81 = arith.constant 0 : index
    %c0_82 = arith.constant 0 : index
    %117 = vector.load %arg6[%c0_81, %c0_82] : memref<64x128xbf16, #tpu.memory_space<vmem>>, vector<64x128xbf16>
    %cst_83 = arith.constant dense<0.000000e+00> : vector<8x128xf32>
    %118 = tpu.matmul %116, %117, %cst_83 {dimension_numbers = #tpu.dot_dimension_numbers<[1], [0], [0], [1], [0, 0, 1, 1], [], []>} : vector<8x64xbf16>, vector<64x128xbf16>, vector<8x128xf32> -> vector<8x128xf32>
    %c0_84 = arith.constant 0 : index
    %c0_85 = arith.constant 0 : index
    %119 = vector.load %arg7[%c0_84, %c0_85] : memref<1x128xf32, #tpu.memory_space<vmem>>, vector<1x128xf32>
    %120 = vector.broadcast %119 : vector<1x128xf32> to vector<8x128xf32>
    %121 = arith.addf %118, %120 : vector<8x128xf32>
    %c0_86 = arith.constant 0 : index
    %c0_87 = arith.constant 0 : index
    %122 = vector.load %arg9[%c0_86, %c0_87] : memref<8x128xf32, #tpu.memory_space<vmem>>, vector<8x128xf32>
    tpu.vector_store %arg9[%c0_86, %c0_87], %121 {strides = array<i32>} : memref<8x128xf32, #tpu.memory_space<vmem>>, vector<8x128xf32>,
    return
  }
  func.func @transform_0(%arg0: i32) -> (i32, i32, i32) {
    %c0_i32 = arith.constant 0 : i32
    %c0_i32_0 = arith.constant 0 : i32
    %c0_i32_1 = arith.constant 0 : i32
    return %arg0, %c0_i32, %c0_i32_0 : i32, i32, i32
  }
  func.func @transform_1(%arg0: i32) -> (i32, i32) {
    %c0_i32 = arith.constant 0 : i32
    %c0_i32_0 = arith.constant 0 : i32
    %c0_i32_1 = arith.constant 0 : i32
    return %c0_i32, %c0_i32_0 : i32, i32
  }
  func.func @transform_2(%arg0: i32) -> (i32, i32, i32) {
    %c0_i32 = arith.constant 0 : i32
    %c0_i32_0 = arith.constant 0 : i32
    %c0_i32_1 = arith.constant 0 : i32
    %c0_i32_2 = arith.constant 0 : i32
    return %c0_i32, %c0_i32_0, %c0_i32_1 : i32, i32, i32
  }
  func.func @transform_3(%arg0: i32) -> (i32, i32, i32) {
    %c0_i32 = arith.constant 0 : i32
    %c0_i32_0 = arith.constant 0 : i32
    %c0_i32_1 = arith.constant 0 : i32
    %c0_i32_2 = arith.constant 0 : i32
    return %c0_i32, %c0_i32_0, %c0_i32_1 : i32, i32, i32
  }
  func.func @transform_4(%arg0: i32) -> (i32, i32, i32) {
    %c0_i32 = arith.constant 0 : i32
    %c0_i32_0 = arith.constant 0 : i32
    %c0_i32_1 = arith.constant 0 : i32
    %c0_i32_2 = arith.constant 0 : i32
    return %c0_i32, %c0_i32_0, %c0_i32_1 : i32, i32, i32
  }
  func.func @transform_5(%arg0: i32) -> (i32, i32) {
    %c0_i32 = arith.constant 0 : i32
    %c0_i32_0 = arith.constant 0 : i32
    %c0_i32_1 = arith.constant 0 : i32
    return %c0_i32, %c0_i32_0 : i32, i32
  }
  func.func @transform_6(%arg0: i32) -> (i32, i32) {
    %c0_i32 = arith.constant 0 : i32
    %c0_i32_0 = arith.constant 0 : i32
    %c0_i32_1 = arith.constant 0 : i32
    return %c0_i32, %c0_i32_0 : i32, i32
  }
  func.func @transform_7(%arg0: i32) -> (i32, i32) {
    %c0_i32 = arith.constant 0 : i32
    %c0_i32_0 = arith.constant 0 : i32
    return %arg0, %c0_i32 : i32, i32
  }
  func.func @transform_8(%arg0: i32) -> (i32, i32) {
    %c0_i32 = arith.constant 0 : i32
    %c0_i32_0 = arith.constant 0 : i32
    return %arg0, %c0_i32 : i32, i32
  }
}

</mosaic_0001>

<llo_original>
// kernel: tpu_custom_call.1
$region0: #{tpu_custom_call.1}
  #allocation0 [shape = 'u32[]', space=smem, size = 0x4, offset = 0x4, fixed_abs, tag = 'smem constant byte address 0x4 - core index']
  #allocation1 [shape = 'u32[144,128]{1,0:T(1,128)}', space=vmem, size = 0x12000, scoped, tag = 'internal scratch']
  #allocation2 [shape = 'f32[64,32]{1,0:T(8,128)}', space=vmem, size = 0x8000, scoped, tag = 'scratch operand']
  #allocation3 [shape = 'bf16[64,32]{1,0:T(16,128)(2,1)}', space=vmem, size = 0x4000, scoped, tag = 'scratch operand']
  %s0 = inlined_call_operand.hbm [shape: f32[1,64,1], index: 0, kind: input, shape index: {}]
  %s1 = inlined_call_operand.hbm [shape: f32[1,32], index: 1, kind: input, shape index: {}]
  %s2 = inlined_call_operand.hbm [shape: bf16[1,32,32], index: 2, kind: input, shape index: {}]
  %s3 = inlined_call_operand.hbm [shape: bf16[2,32,32], index: 3, kind: input, shape index: {}]
  %s4 = inlined_call_operand.hbm [shape: f32[2,1,32], index: 4, kind: input, shape index: {}]
  %s5 = inlined_call_operand.hbm [shape: bf16[64,128], index: 5, kind: input, shape index: {}]
  %s6 = inlined_call_operand.hbm [shape: f32[1,128], index: 6, kind: input, shape index: {}]
  %s7 = inlined_call_operand.hbm [shape: f32[8,64], index: 7, kind: output, shape index: {0}]
  %s8 = inlined_call_operand.hbm [shape: f32[8,128], index: 8, kind: output, shape index: {1}]
  %9 = xla_tuple %s7, %s8
  %s10 = sld [smem:[#allocation0]]
  $region74: #{tpu_custom_call.1} parent=0
    _
  %s12 = ssub.s32 1, %s10
  %s13 = scalar_select 0, %s12, %s10
  $region1: #{tpu_custom_call.1} parent=0
    #allocation4 [shape = 'u8[32768]{0}', space=vmem, size = 0x8000, scoped, tag = 'input window, operand 0, single buffered']
    #allocation5 [shape = 's32[1]{0}', space=sflag, size = 0x4, scoped, tag = 'scoped memory for tpu_custom_call.1']
    #allocation6 [shape = 's32[1]{0}', space=sflag, size = 0x4, scoped, tag = 'scoped memory for tpu_custom_call.1']
    #allocation7 [shape = 'u8[512]{0}', space=vmem, size = 0x400, scoped, tag = 'input window, operand 1, single buffered']
    #allocation8 [shape = 's32[1]{0}', space=sflag, size = 0x4, scoped, tag = 'scoped memory for tpu_custom_call.1']
    #allocation9 [shape = 'u8[8192]{0}', space=vmem, size = 0x2000, scoped, tag = 'input window, operand 2, single buffered']
    #allocation10 [shape = 'u8[16384]{0}', space=vmem, size = 0x4000, scoped, tag = 'input window, operand 3, single buffered']
    #allocation11 [shape = 's32[1]{0}', space=sflag, size = 0x4, scoped, tag = 'scoped memory for tpu_custom_call.1']
    #allocation12 [shape = 'u8[1024]{0}', space=vmem, size = 0x400, scoped, tag = 'input window, operand 4, single buffered']
    #allocation13 [shape = 'u8[16384]{0}', space=vmem, size = 0x4000, scoped, tag = 'input window, operand 5, single buffered']
    #allocation14 [shape = 's32[1]{0}', space=sflag, size = 0x4, scoped, tag = 'scoped memory for tpu_custom_call.1']
    #allocation15 [shape = 'u8[512]{0}', space=vmem, size = 0x400, scoped, tag = 'input window, operand 6, single buffered']
    #allocation16 [shape = 'u8[4096]{0}', space=vmem, size = 0x1000, scoped, tag = 'output window, operand 0, single buffered']
    #allocation17 [shape = 'u8[4096]{0}', space=vmem, size = 0x1000, scoped, tag = 'output window, operand 1, single buffered']
    #allocation18 [shape = 's32[1]{0}', space=sflag, size = 0x4, scoped, tag = 'scoped memory for tpu_custom_call.1']
    %14 = vsyncpa [#allocation5], 0
    %15 = vsyncpa [#allocation8], 0
    %16 = vsyncpa [#allocation11], 0
    %17 = vsyncpa [#allocation14], 0
    %18 = vsyncpa [#allocation6], 0
    %19 = vsyncpa [#allocation18], 0
    // Predicated region
    $region2: #{tpu_custom_call.1} parent=1 // pred_check
      _
    $region3: #{tpu_custom_call.1} parent=1 // pred_check_branch
      %21 = sbr.rel (0) target = $region5
    $region4: #{tpu_custom_call.1} parent=1 // pred_region
      %s23 = ssub.s32 1024, 1024
      %24 = vsyncadd [#allocation5], %s23
      %s25 = sshll.u32 [#allocation4], 4
      %s26 = int_to_ptr.vmem [resolvable:$true] %s25
      %31 = dma.hbm_to_vmem [thread:$0]  %s0, 1024, %s26, [#allocation5], 128, 128, 8
    $region5: #{tpu_custom_call.1} parent=1 // pred_fallthru
      _
    // Predicated region
    $region6: #{tpu_custom_call.1} parent=1 // pred_check
      _
    $region7: #{tpu_custom_call.1} parent=1 // pred_check_branch
      %33 = sbr.rel (0) target = $region9
    $region8: #{tpu_custom_call.1} parent=1 // pred_region
      %s35 = ssub.s32 16, 16
      %36 = vsyncadd [#allocation8], %s35
      %s38 = sshll.u32 [#allocation7], 4
      %s39 = int_to_ptr.vmem [resolvable:$true] %s38
      %41 = dma.hbm_to_vmem [thread:$0]  %s1, 16, %s39, [#allocation8]
    $region9: #{tpu_custom_call.1} parent=1 // pred_fallthru
      _
    // Predicated region
    $region10: #{tpu_custom_call.1} parent=1 // pred_check
      _
    $region11: #{tpu_custom_call.1} parent=1 // pred_check_branch
      %43 = sbr.rel (0) target = $region13
    $region12: #{tpu_custom_call.1} parent=1 // pred_region
      %s45 = ssub.s32 256, 256
      %46 = vsyncadd [#allocation8], %s45
      %s47 = sshll.u32 [#allocation9], 4
      %s48 = int_to_ptr.vmem [resolvable:$true] %s47
      %53 = dma.hbm_to_vmem [thread:$0]  %s2, 256, %s48, [#allocation8], 64, 64, 4
    $region13: #{tpu_custom_call.1} parent=1 // pred_fallthru
      _
    // Predicated region
    $region14: #{tpu_custom_call.1} parent=1 // pred_check
      _
    $region15: #{tpu_custom_call.1} parent=1 // pred_check_branch
      %55 = sbr.rel (0) target = $region17
    $region16: #{tpu_custom_call.1} parent=1 // pred_region
      %s57 = ssub.s32 512, 512
      %58 = vsyncadd [#allocation11], %s57
      %s59 = sshll.u32 [#allocation10], 4
      %s60 = int_to_ptr.vmem [resolvable:$true] %s59
      %65 = dma.hbm_to_vmem [thread:$0]  %s3, 512, %s60, [#allocation11], 64, 64, 4
    $region17: #{tpu_custom_call.1} parent=1 // pred_fallthru
      _
    // Predicated region
    $region18: #{tpu_custom_call.1} parent=1 // pred_check
      _
    $region19: #{tpu_custom_call.1} parent=1 // pred_check_branch
      %67 = sbr.rel (0) target = $region21
    $region20: #{tpu_custom_call.1} parent=1 // pred_region
      %s69 = ssub.s32 32, 32
      %70 = vsyncadd [#allocation11], %s69
      %s71 = sshll.u32 [#allocation12], 4
      %s72 = int_to_ptr.vmem [resolvable:$true] %s71
      %77 = dma.hbm_to_vmem [thread:$0]  %s4, 32, %s72, [#allocation11], 16, 16, 1
    $region21: #{tpu_custom_call.1} parent=1 // pred_fallthru
      _
    // Predicated region
    $region22: #{tpu_custom_call.1} parent=1 // pred_check
      _
    $region23: #{tpu_custom_call.1} parent=1 // pred_check_branch
      %79 = sbr.rel (0) target = $region25
    $region24: #{tpu_custom_call.1} parent=1 // pred_region
      %s81 = ssub.s32 512, 512
      %82 = vsyncadd [#allocation14], %s81
      %s83 = sshll.u32 [#allocation13], 4
      %s84 = int_to_ptr.vmem [resolvable:$true] %s83
      %89 = dma.hbm_to_vmem [thread:$0]  %s5, 512, %s84, [#allocation14], 64, 64, 4
    $region25: #{tpu_custom_call.1} parent=1 // pred_fallthru
      _
    // Predicated region
    $region26: #{tpu_custom_call.1} parent=1 // pred_check
      _
    $region27: #{tpu_custom_call.1} parent=1 // pred_check_branch
      %91 = sbr.rel (0) target = $region29
    $region28: #{tpu_custom_call.1} parent=1 // pred_region
      %s93 = ssub.s32 16, 16
      %94 = vsyncadd [#allocation14], %s93
      %s96 = sshll.u32 [#allocation15], 4
      %s97 = int_to_ptr.vmem [resolvable:$true] %s96
      %99 = dma.hbm_to_vmem [thread:$0]  %s6, 16, %s97, [#allocation14]
    $region29: #{tpu_custom_call.1} parent=1 // pred_fallthru
      _
    // Predicated region
    $region30: #{tpu_custom_call.1} parent=1 // pred_check
      _
    $region31: #{tpu_custom_call.1} parent=1 // pred_check_branch
      %101 = sbr.rel (0) target = $region33
    $region32: #{tpu_custom_call.1} parent=1 // pred_region
      %102 = dma.done [#allocation5], 1024
    $region33: #{tpu_custom_call.1} parent=1 // pred_fallthru
      _
    // Predicated region
    $region34: #{tpu_custom_call.1} parent=1 // pred_check
      _
    $region35: #{tpu_custom_call.1} parent=1 // pred_check_branch
      %104 = sbr.rel (0) target = $region37
    $region36: #{tpu_custom_call.1} parent=1 // pred_region
      %105 = dma.done [#allocation8], 16
    $region37: #{tpu_custom_call.1} parent=1 // pred_fallthru
      _
    // Predicated region
    $region38: #{tpu_custom_call.1} parent=1 // pred_check
      _
    $region39: #{tpu_custom_call.1} parent=1 // pred_check_branch
      %107 = sbr.rel (0) target = $region41
    $region40: #{tpu_custom_call.1} parent=1 // pred_region
      %108 = dma.done [#allocation8], 256
    $region41: #{tpu_custom_call.1} parent=1 // pred_fallthru
      _
    // Predicated region
    $region42: #{tpu_custom_call.1} parent=1 // pred_check
      _
    $region43: #{tpu_custom_call.1} parent=1 // pred_check_branch
      %110 = sbr.rel (0) target = $region45
    $region44: #{tpu_custom_call.1} parent=1 // pred_region
      %111 = dma.done [#allocation11], 512
    $region45: #{tpu_custom_call.1} parent=1 // pred_fallthru
      _
    // Predicated region
    $region46: #{tpu_custom_call.1} parent=1 // pred_check
      _
    $region47: #{tpu_custom_call.1} parent=1 // pred_check_branch
      %113 = sbr.rel (0) target = $region49
    $region48: #{tpu_custom_call.1} parent=1 // pred_region
      %114 = dma.done [#allocation11], 32
    $region49: #{tpu_custom_call.1} parent=1 // pred_fallthru
      _
    // Predicated region
    $region50: #{tpu_custom_call.1} parent=1 // pred_check
      _
    $region51: #{tpu_custom_call.1} parent=1 // pred_check_branch
      %116 = sbr.rel (0) target = $region53
    $region52: #{tpu_custom_call.1} parent=1 // pred_region
      %117 = dma.done [#allocation14], 512
    $region53: #{tpu_custom_call.1} parent=1 // pred_fallthru
      _
    // Predicated region
    $region54: #{tpu_custom_call.1} parent=1 // pred_check
      _
    $region55: #{tpu_custom_call.1} parent=1 // pred_check_branch
      %119 = sbr.rel (0) target = $region57
    $region56: #{tpu_custom_call.1} parent=1 // pred_region
      %120 = dma.done [#allocation14], 16
    $region57: #{tpu_custom_call.1} parent=1 // pred_fallthru
      _
    %v122 = vld [vmem:[#allocation4] sm:$0xff]
    %v123 = vld [vmem:[#allocation4 + $0x8] sm:$0xff]
    %v124 = vld [vmem:[#allocation4 + $0x10] sm:$0xff]
    %v125 = vld [vmem:[#allocation4 + $0x18] sm:$0xff]
    %v126 = vld [vmem:[#allocation4 + $0x20] sm:$0xff]
    %v127 = vld [vmem:[#allocation4 + $0x28] sm:$0xff]
    %v128 = vld [vmem:[#allocation4 + $0x30] sm:$0xff]
    %v129 = vld [vmem:[#allocation4 + $0x38] sm:$0xff]
    %v130 = vld [vmem:[#allocation7] sm:$0x1]
    %v131 = vld [vmem:[#allocation12] sm:$0x1]
    %133 = vset.pattern.permute.xlu0 0
    %134 = vperm.xlu0 %133, %v122
    %v135 = vpop.permute.xlu0 %134
    %138 = vset.pattern.permute.xlu0 0
    %139 = vperm.xlu0 %138, %v123
    %v140 = vpop.permute.xlu0 %139
    %143 = vset.pattern.permute.xlu0 0
    %144 = vperm.xlu0 %143, %v124
    %v145 = vpop.permute.xlu0 %144
    %148 = vset.pattern.permute.xlu0 0
    %149 = vperm.xlu0 %148, %v125
    %v150 = vpop.permute.xlu0 %149
    %153 = vset.pattern.permute.xlu0 0
    %154 = vperm.xlu0 %153, %v126
    %v155 = vpop.permute.xlu0 %154
    %158 = vset.pattern.permute.xlu0 0
    %159 = vperm.xlu0 %158, %v127
    %v160 = vpop.permute.xlu0 %159
    %163 = vset.pattern.permute.xlu0 0
    %164 = vperm.xlu0 %163, %v128
    %v165 = vpop.permute.xlu0 %164
    %168 = vset.pattern.permute.xlu0 0
    %169 = vperm.xlu0 %168, %v129
    %v170 = vpop.permute.xlu0 %169
    %v173 = vlaneseq
    %v174 = vshrl.u32 %v173, 7
    %v175 = vsub.s32 0, %v174
    %v176 = vrot.slane %v130, %v175
    %v178 = vmul.f32 %v135, %v176
    %v179 = vmul.f32 %v140, %v176
    %v180 = vmul.f32 %v145, %v176
    %v181 = vmul.f32 %v150, %v176
    %v182 = vmul.f32 %v155, %v176
    %v183 = vmul.f32 %v160, %v176
    %v184 = vmul.f32 %v165, %v176
    %v185 = vmul.f32 %v170, %v176
    %v187 = vlaneseq
    %v188 = vshrl.u32 %v187, 7
    %v189 = vsub.s32 0, %v188
    %v190 = vrot.slane %v131, %v189
    %v192 = vadd.f32 %v178, %v190
    %v193 = vadd.f32 %v179, %v190
    %v194 = vadd.f32 %v180, %v190
    %v195 = vadd.f32 %v181, %v190
    %v196 = vadd.f32 %v182, %v190
    %v197 = vadd.f32 %v183, %v190
    %v198 = vadd.f32 %v184, %v190
    %v199 = vadd.f32 %v185, %v190
    %vm200 = vcmask 261120
    %201 = vst.msk [vmem:[#allocation2] sm:$0xff] %vm200, %v192
    %202 = vst.msk [vmem:[#allocation2 + $0x8] sm:$0xff] %vm200, %v193
    %203 = vst.msk [vmem:[#allocation2 + $0x10] sm:$0xff] %vm200, %v194
    %204 = vst.msk [vmem:[#allocation2 + $0x18] sm:$0xff] %vm200, %v195
    %205 = vst.msk [vmem:[#allocation2 + $0x20] sm:$0xff] %vm200, %v196
    %206 = vst.msk [vmem:[#allocation2 + $0x28] sm:$0xff] %vm200, %v197
    %207 = vst.msk [vmem:[#allocation2 + $0x30] sm:$0xff] %vm200, %v198
    %208 = vst.msk [vmem:[#allocation2 + $0x38] sm:$0xff] %vm200, %v199
    %v209 = vld [vmem:[#allocation10] sm:$0xf]
    %v210 = vld [vmem:[#allocation10 + $0x4] sm:$0xf]
    %v211 = vld [vmem:[#allocation10 + $0x8] sm:$0xf]
    %v212 = vld [vmem:[#allocation10 + $0xc] sm:$0xf]
    %v213 = vld [vmem:[#allocation2] sm:$0xff]
    %v214 = vtanh.pop %v213
    %v215 = vpack.c.bf16 %v214, %v214
    %vm216 = vcmask 257024
    %217 = vst.msk [vmem:[#allocation3] sm:$0xf] %vm216, %v215
    %v218 = vld [vmem:[#allocation2 + $0x8] sm:$0xff]
    %v223 = vunpack.c.l.b16 %v209
    %v224 = vunpack.c.l.b16 %v210
    %v225 = vunpack.c.l.b16 %v211
    %v226 = vunpack.c.l.b16 %v212
    %v227 = vpack.c.b16 %v224, %v223
    %v228 = vpack.c.b16 %v226, %v225
    %v232 = vsel %vm200, %v215, 0
    %234 = vmatprep.subr.bf16.mxu0 0
    %235 = vmatpush1.bf16.msra.mxu0 %v227
    %236 = vmatprep.subr.bf16.mxu0 0
    %237 = vmatpush1.bf16.msra.mxu0 %v228
    %238 = vmatprep.subr.bf16.mxu0 0
    %239 = vmatpush1.bf16.msra.mxu0 0
    %240 = vmatprep.subr.bf16.mxu0 0
    %241 = vmatpush1.bf16.msra.mxu0 0
    %242 = vmatprep.subr.bf16.mxu0 0
    %243 = vmatpush1.bf16.msra.mxu0 0
    %244 = vmatprep.subr.bf16.mxu0 0
    %245 = vmatpush1.bf16.msra.mxu0 0
    %246 = vmatprep.subr.bf16.mxu0 0
    %247 = vmatpush1.bf16.msra.mxu0 0
    %248 = vmatprep.subr.bf16.mxu0 0
    %249 = vmatpush1.bf16.msra.mxu0 0
    %250 = vmatprep.subr.bf16.mxu0 0
    %251 = vmatpush1.bf16.msra.mxu0 0
    %252 = vmatprep.subr.bf16.mxu0 0
    %253 = vmatpush1.bf16.msra.mxu0 0
    %254 = vmatprep.subr.bf16.mxu0 0
    %255 = vmatpush1.bf16.msra.mxu0 0
    %256 = vmatprep.subr.bf16.mxu0 0
    %257 = vmatpush1.bf16.msra.mxu0 0
    %258 = vmatprep.subr.bf16.mxu0 0
    %259 = vmatpush1.bf16.msra.mxu0 0
    %260 = vmatprep.subr.bf16.mxu0 0
    %261 = vmatpush1.bf16.msra.mxu0 0
    %262 = vmatprep.subr.bf16.mxu0 0
    %263 = vmatpush1.bf16.msra.mxu0 0
    %264 = vmatprep.subr.bf16.mxu0 0
    %265 = vmatpush1.bf16.msra.mxu0 0
    %266 = vmatprep.mubr.bf16.mxu0 0
    %267 = vmatmul.mubr.bf16.gmra.mrb[0].mxu0 %v232
    %v268 = vpop.f32.mrb[0].mxu0
    %v269 = vadd.f32 0.0, %v268
    %v270 = vpop.f32.mrb[0].mxu0
    %v271 = vpop.f32.mrb[0].mxu0
    %v272 = vpop.f32.mrb[0].mxu0
    %273 = vdwg.mxu0
    %v274 = vadd.f32 %v218, %v269
    %v275 = vtanh.pop %v274
    %v276 = vpack.c.bf16 %v275, %v275
    %v278 = vrot.slane %v276, 4
    %vm280 = vcmask 261124
    %281 = vst.msk [vmem:[#allocation3] sm:$0xf0] %vm280, %v278
    %v282 = vld [vmem:[#allocation2 + $0x10] sm:$0xff]
    %v284 = vsel %vm200, %v276, 0
    %286 = vmatprep.subr.bf16.mxu0 0
    %287 = vmatpush1.bf16.msra.mxu0 %v227
    %288 = vmatprep.subr.bf16.mxu0 0
    %289 = vmatpush1.bf16.msra.mxu0 %v228
    %290 = vmatprep.subr.bf16.mxu0 0
    %291 = vmatpush1.bf16.msra.mxu0 0
    %292 = vmatprep.subr.bf16.mxu0 0
    %293 = vmatpush1.bf16.msra.mxu0 0
    %294 = vmatprep.subr.bf16.mxu0 0
    %295 = vmatpush1.bf16.msra.mxu0 0
    %296 = vmatprep.subr.bf16.mxu0 0
    %297 = vmatpush1.bf16.msra.mxu0 0
    %298 = vmatprep.subr.bf16.mxu0 0
    %299 = vmatpush1.bf16.msra.mxu0 0
    %300 = vmatprep.subr.bf16.mxu0 0
    %301 = vmatpush1.bf16.msra.mxu0 0
    %302 = vmatprep.subr.bf16.mxu0 0
    %303 = vmatpush1.bf16.msra.mxu0 0
    %304 = vmatprep.subr.bf16.mxu0 0
    %305 = vmatpush1.bf16.msra.mxu0 0
    %306 = vmatprep.subr.bf16.mxu0 0
    %307 = vmatpush1.bf16.msra.mxu0 0
    %308 = vmatprep.subr.bf16.mxu0 0
    %309 = vmatpush1.bf16.msra.mxu0 0
    %310 = vmatprep.subr.bf16.mxu0 0
    %311 = vmatpush1.bf16.msra.mxu0 0
    %312 = vmatprep.subr.bf16.mxu0 0
    %313 = vmatpush1.bf16.msra.mxu0 0
    %314 = vmatprep.subr.bf16.mxu0 0
    %315 = vmatpush1.bf16.msra.mxu0 0
    %316 = vmatprep.subr.bf16.mxu0 0
    %317 = vmatpush1.bf16.msra.mxu0 0
    %318 = vmatprep.mubr.bf16.mxu0 0
    %319 = vmatmul.mubr.bf16.gmra.mrb[0].mxu0 %v284
    %v320 = vpop.f32.mrb[0].mxu0
    %v321 = vadd.f32 0.0, %v320
    %v322 = vpop.f32.mrb[0].mxu0
    %v323 = vpop.f32.mrb[0].mxu0
    %v324 = vpop.f32.mrb[0].mxu0
    %325 = vdwg.mxu0
    %v326 = vadd.f32 %v282, %v321
    %v327 = vtanh.pop %v326
    %v328 = vpack.c.bf16 %v327, %v327
    %329 = vst.msk [vmem:[#allocation3 + $0x8] sm:$0xf] %vm216, %v328
    %v330 = vld [vmem:[#allocation2 + $0x18] sm:$0xff]
    %v332 = vsel %vm200, %v328, 0
    %334 = vmatprep.subr.bf16.mxu0 0
    %335 = vmatpush1.bf16.msra.mxu0 %v227
    %336 = vmatprep.subr.bf16.mxu0 0
    %337 = vmatpush1.bf16.msra.mxu0 %v228
    %338 = vmatprep.subr.bf16.mxu0 0
    %339 = vmatpush1.bf16.msra.mxu0 0
    %340 = vmatprep.subr.bf16.mxu0 0
    %341 = vmatpush1.bf16.msra.mxu0 0
    %342 = vmatprep.subr.bf16.mxu0 0
    %343 = vmatpush1.bf16.msra.mxu0 0
    %344 = vmatprep.subr.bf16.mxu0 0
    %345 = vmatpush1.bf16.msra.mxu0 0
    %346 = vmatprep.subr.bf16.mxu0 0
    %347 = vmatpush1.bf16.msra.mxu0 0
    %348 = vmatprep.subr.bf16.mxu0 0
    %349 = vmatpush1.bf16.msra.mxu0 0
    %350 = vmatprep.subr.bf16.mxu0 0
    %351 = vmatpush1.bf16.msra.mxu0 0
    %352 = vmatprep.subr.bf16.mxu0 0
    %353 = vmatpush1.bf16.msra.mxu0 0
    %354 = vmatprep.subr.bf16.mxu0 0
    %355 = vmatpush1.bf16.msra.mxu0 0
    %356 = vmatprep.subr.bf16.mxu0 0
    %357 = vmatpush1.bf16.msra.mxu0 0
    %358 = vmatprep.subr.bf16.mxu0 0
    %359 = vmatpush1.bf16.msra.mxu0 0
    %360 = vmatprep.subr.bf16.mxu0 0
    %361 = vmatpush1.bf16.msra.mxu0 0
    %362 = vmatprep.subr.bf16.mxu0 0
    %363 = vmatpush1.bf16.msra.mxu0 0
    %364 = vmatprep.subr.bf16.mxu0 0
    %365 = vmatpush1.bf16.msra.mxu0 0
    %366 = vmatprep.mubr.bf16.mxu0 0
    %367 = vmatmul.mubr.bf16.gmra.mrb[0].mxu0 %v332
    %v368 = vpop.f32.mrb[0].mxu0
    %v369 = vadd.f32 0.0, %v368
    %v370 = vpop.f32.mrb[0].mxu0
    %v371 = vpop.f32.mrb[0].mxu0
    %v372 = vpop.f32.mrb[0].mxu0
    %373 = vdwg.mxu0
    %v374 = vadd.f32 %v330, %v369
    %v375 = vtanh.pop %v374
    %v376 = vpack.c.bf16 %v375, %v375
    %v378 = vrot.slane %v376, 4
    %380 = vst.msk [vmem:[#allocation3 + $0x8] sm:$0xf0] %vm280, %v378
    %v381 = vld [vmem:[#allocation2 + $0x20] sm:$0xff]
    %v383 = vsel %vm200, %v376, 0
    %385 = vmatprep.subr.bf16.mxu0 0
    %386 = vmatpush1.bf16.msra.mxu0 %v227
    %387 = vmatprep.subr.bf16.mxu0 0
    %388 = vmatpush1.bf16.msra.mxu0 %v228
    %389 = vmatprep.subr.bf16.mxu0 0
    %390 = vmatpush1.bf16.msra.mxu0 0
    %391 = vmatprep.subr.bf16.mxu0 0
    %392 = vmatpush1.bf16.msra.mxu0 0
    %393 = vmatprep.subr.bf16.mxu0 0
    %394 = vmatpush1.bf16.msra.mxu0 0
    %395 = vmatprep.subr.bf16.mxu0 0
    %396 = vmatpush1.bf16.msra.mxu0 0
    %397 = vmatprep.subr.bf16.mxu0 0
    %398 = vmatpush1.bf16.msra.mxu0 0
    %399 = vmatprep.subr.bf16.mxu0 0
    %400 = vmatpush1.bf16.msra.mxu0 0
    %401 = vmatprep.subr.bf16.mxu0 0
    %402 = vmatpush1.bf16.msra.mxu0 0
    %403 = vmatprep.subr.bf16.mxu0 0
    %404 = vmatpush1.bf16.msra.mxu0 0
    %405 = vmatprep.subr.bf16.mxu0 0
    %406 = vmatpush1.bf16.msra.mxu0 0
    %407 = vmatprep.subr.bf16.mxu0 0
    %408 = vmatpush1.bf16.msra.mxu0 0
    %409 = vmatprep.subr.bf16.mxu0 0
    %410 = vmatpush1.bf16.msra.mxu0 0
    %411 = vmatprep.subr.bf16.mxu0 0
    %412 = vmatpush1.bf16.msra.mxu0 0
    %413 = vmatprep.subr.bf16.mxu0 0
    %414 = vmatpush1.bf16.msra.mxu0 0
    %415 = vmatprep.subr.bf16.mxu0 0
    %416 = vmatpush1.bf16.msra.mxu0 0
    %417 = vmatprep.mubr.bf16.mxu0 0
    %418 = vmatmul.mubr.bf16.gmra.mrb[0].mxu0 %v383
    %v419 = vpop.f32.mrb[0].mxu0
    %v420 = vadd.f32 0.0, %v419
    %v421 = vpop.f32.mrb[0].mxu0
    %v422 = vpop.f32.mrb[0].mxu0
    %v423 = vpop.f32.mrb[0].mxu0
    %424 = vdwg.mxu0
    %v425 = vadd.f32 %v381, %v420
    %v426 = vtanh.pop %v425
    %v427 = vpack.c.bf16 %v426, %v426
    %428 = vst.msk [vmem:[#allocation3 + $0x10] sm:$0xf] %vm216, %v427
    %v429 = vld [vmem:[#allocation2 + $0x28] sm:$0xff]
    %v431 = vsel %vm200, %v427, 0
    %433 = vmatprep.subr.bf16.mxu0 0
    %434 = vmatpush1.bf16.msra.mxu0 %v227
    %435 = vmatprep.subr.bf16.mxu0 0
    %436 = vmatpush1.bf16.msra.mxu0 %v228
    %437 = vmatprep.subr.bf16.mxu0 0
    %438 = vmatpush1.bf16.msra.mxu0 0
    %439 = vmatprep.subr.bf16.mxu0 0
    %440 = vmatpush1.bf16.msra.mxu0 0
    %441 = vmatprep.subr.bf16.mxu0 0
    %442 = vmatpush1.bf16.msra.mxu0 0
    %443 = vmatprep.subr.bf16.mxu0 0
    %444 = vmatpush1.bf16.msra.mxu0 0
    %445 = vmatprep.subr.bf16.mxu0 0
    %446 = vmatpush1.bf16.msra.mxu0 0
    %447 = vmatprep.subr.bf16.mxu0 0
    %448 = vmatpush1.bf16.msra.mxu0 0
    %449 = vmatprep.subr.bf16.mxu0 0
    %450 = vmatpush1.bf16.msra.mxu0 0
    %451 = vmatprep.subr.bf16.mxu0 0
    %452 = vmatpush1.bf16.msra.mxu0 0
    %453 = vmatprep.subr.bf16.mxu0 0
    %454 = vmatpush1.bf16.msra.mxu0 0
    %455 = vmatprep.subr.bf16.mxu0 0
    %456 = vmatpush1.bf16.msra.mxu0 0
    %457 = vmatprep.subr.bf16.mxu0 0
    %458 = vmatpush1.bf16.msra.mxu0 0
    %459 = vmatprep.subr.bf16.mxu0 0
    %460 = vmatpush1.bf16.msra.mxu0 0
    %461 = vmatprep.subr.bf16.mxu0 0
    %462 = vmatpush1.bf16.msra.mxu0 0
    %463 = vmatprep.subr.bf16.mxu0 0
    %464 = vmatpush1.bf16.msra.mxu0 0
    %465 = vmatprep.mubr.bf16.mxu0 0
    %466 = vmatmul.mubr.bf16.gmra.mrb[0].mxu0 %v431
    %v467 = vpop.f32.mrb[0].mxu0
    %v468 = vadd.f32 0.0, %v467
    %v469 = vpop.f32.mrb[0].mxu0
    %v470 = vpop.f32.mrb[0].mxu0
    %v471 = vpop.f32.mrb[0].mxu0
    %472 = vdwg.mxu0
    %v473 = vadd.f32 %v429, %v468
    %v474 = vtanh.pop %v473
    %v475 = vpack.c.bf16 %v474, %v474
    %v477 = vrot.slane %v475, 4
    %479 = vst.msk [vmem:[#allocation3 + $0x10] sm:$0xf0] %vm280, %v477
    %v480 = vld [vmem:[#allocation2 + $0x30] sm:$0xff]
    %v482 = vsel %vm200, %v475, 0
    %484 = vmatprep.subr.bf16.mxu0 0
    %485 = vmatpush1.bf16.msra.mxu0 %v227
    %486 = vmatprep.subr.bf16.mxu0 0
    %487 = vmatpush1.bf16.msra.mxu0 %v228
    %488 = vmatprep.subr.bf16.mxu0 0
    %489 = vmatpush1.bf16.msra.mxu0 0
    %490 = vmatprep.subr.bf16.mxu0 0
    %491 = vmatpush1.bf16.msra.mxu0 0
    %492 = vmatprep.subr.bf16.mxu0 0
    %493 = vmatpush1.bf16.msra.mxu0 0
    %494 = vmatprep.subr.bf16.mxu0 0
    %495 = vmatpush1.bf16.msra.mxu0 0
    %496 = vmatprep.subr.bf16.mxu0 0
    %497 = vmatpush1.bf16.msra.mxu0 0
    %498 = vmatprep.subr.bf16.mxu0 0
    %499 = vmatpush1.bf16.msra.mxu0 0
    %500 = vmatprep.subr.bf16.mxu0 0
    %501 = vmatpush1.bf16.msra.mxu0 0
    %502 = vmatprep.subr.bf16.mxu0 0
    %503 = vmatpush1.bf16.msra.mxu0 0
    %504 = vmatprep.subr.bf16.mxu0 0
    %505 = vmatpush1.bf16.msra.mxu0 0
    %506 = vmatprep.subr.bf16.mxu0 0
    %507 = vmatpush1.bf16.msra.mxu0 0
    %508 = vmatprep.subr.bf16.mxu0 0
    %509 = vmatpush1.bf16.msra.mxu0 0
    %510 = vmatprep.subr.bf16.mxu0 0
    %511 = vmatpush1.bf16.msra.mxu0 0
    %512 = vmatprep.subr.bf16.mxu0 0
    %513 = vmatpush1.bf16.msra.mxu0 0
    %514 = vmatprep.subr.bf16.mxu0 0
    %515 = vmatpush1.bf16.msra.mxu0 0
    %516 = vmatprep.mubr.bf16.mxu0 0
    %517 = vmatmul.mubr.bf16.gmra.mrb[0].mxu0 %v482
    %v518 = vpop.f32.mrb[0].mxu0
    %v519 = vadd.f32 0.0, %v518
    %v520 = vpop.f32.mrb[0].mxu0
    %v521 = vpop.f32.mrb[0].mxu0
    %v522 = vpop.f32.mrb[0].mxu0
    %523 = vdwg.mxu0
    %v524 = vadd.f32 %v480, %v519
    %v525 = vtanh.pop %v524
    %v526 = vpack.c.bf16 %v525, %v525
    %527 = vst.msk [vmem:[#allocation3 + $0x18] sm:$0xf] %vm216, %v526
    %v528 = vld [vmem:[#allocation2 + $0x38] sm:$0xff]
    %v530 = vsel %vm200, %v526, 0
    %532 = vmatprep.subr.bf16.mxu0 0
    %533 = vmatpush1.bf16.msra.mxu0 %v227
    %534 = vmatprep.subr.bf16.mxu0 0
    %535 = vmatpush1.bf16.msra.mxu0 %v228
    %536 = vmatprep.subr.bf16.mxu0 0
    %537 = vmatpush1.bf16.msra.mxu0 0
    %538 = vmatprep.subr.bf16.mxu0 0
    %539 = vmatpush1.bf16.msra.mxu0 0
    %540 = vmatprep.subr.bf16.mxu0 0
    %541 = vmatpush1.bf16.msra.mxu0 0
    %542 = vmatprep.subr.bf16.mxu0 0
    %543 = vmatpush1.bf16.msra.mxu0 0
    %544 = vmatprep.subr.bf16.mxu0 0
    %545 = vmatpush1.bf16.msra.mxu0 0
    %546 = vmatprep.subr.bf16.mxu0 0
    %547 = vmatpush1.bf16.msra.mxu0 0
    %548 = vmatprep.subr.bf16.mxu0 0
    %549 = vmatpush1.bf16.msra.mxu0 0
    %550 = vmatprep.subr.bf16.mxu0 0
    %551 = vmatpush1.bf16.msra.mxu0 0
    %552 = vmatprep.subr.bf16.mxu0 0
    %553 = vmatpush1.bf16.msra.mxu0 0
    %554 = vmatprep.subr.bf16.mxu0 0
    %555 = vmatpush1.bf16.msra.mxu0 0
    %556 = vmatprep.subr.bf16.mxu0 0
    %557 = vmatpush1.bf16.msra.mxu0 0
    %558 = vmatprep.subr.bf16.mxu0 0
    %559 = vmatpush1.bf16.msra.mxu0 0
    %560 = vmatprep.subr.bf16.mxu0 0
    %561 = vmatpush1.bf16.msra.mxu0 0
    %562 = vmatprep.subr.bf16.mxu0 0
    %563 = vmatpush1.bf16.msra.mxu0 0
    %564 = vmatprep.mubr.bf16.mxu0 0
    %565 = vmatmul.mubr.bf16.gmra.mrb[0].mxu0 %v530
    %v566 = vpop.f32.mrb[0].mxu0
    %v567 = vadd.f32 0.0, %v566
    %v568 = vpop.f32.mrb[0].mxu0
    %v569 = vpop.f32.mrb[0].mxu0
    %v570 = vpop.f32.mrb[0].mxu0
    %571 = vdwg.mxu0
    %v572 = vadd.f32 %v528, %v567
    %v573 = vtanh.pop %v572
    %v574 = vpack.c.bf16 %v573, %v573
    %v576 = vrot.slane %v574, 4
    %578 = vst.msk [vmem:[#allocation3 + $0x18] sm:$0xf0] %vm280, %v576
    %s579 = scalar_lea.vmem [#allocation12], 1
    %v580 = vld [vmem:[%s579] sm:$0x1]
    %v581 = vld [vmem:[#allocation3] sm:$0xff]
    %v582 = vld [vmem:[#allocation3 + $0x8] sm:$0xff]
    %v583 = vld [vmem:[#allocation3 + $0x10] sm:$0xff]
    %v584 = vld [vmem:[#allocation3 + $0x18] sm:$0xff]
    %v585 = vld [vmem:[#allocation9] sm:$0xf]
    %v586 = vld [vmem:[#allocation9 + $0x4] sm:$0xf]
    %v587 = vld [vmem:[#allocation9 + $0x8] sm:$0xf]
    %v588 = vld [vmem:[#allocation9 + $0xc] sm:$0xf]
    %v590 = vlaneseq
    %v591 = vshrl.u32 %v590, 7
    %v592 = vsub.s32 0, %v591
    %v593 = vrot.slane %v580, %v592
    %v599 = vunpack.c.l.b16 %v585
    %v600 = vunpack.c.l.b16 %v586
    %v601 = vunpack.c.l.b16 %v587
    %v602 = vunpack.c.l.b16 %v588
    %v603 = vpack.c.b16 %v600, %v599
    %v604 = vpack.c.b16 %v602, %v601
    %v608 = vsel %vm200, %v581, 0
    %v611 = vsel %vm200, %v582, 0
    %v614 = vsel %vm200, %v583, 0
    %v617 = vsel %vm200, %v584, 0
    %619 = vmatprep.subr.bf16.mxu0 0
    %620 = vmatpush1.bf16.msra.mxu0 %v603
    %621 = vmatprep.subr.bf16.mxu0 0
    %622 = vmatpush1.bf16.msra.mxu0 %v604
    %623 = vmatprep.subr.bf16.mxu0 0
    %624 = vmatpush1.bf16.msra.mxu0 0
    %625 = vmatprep.subr.bf16.mxu0 0
    %626 = vmatpush1.bf16.msra.mxu0 0
    %627 = vmatprep.subr.bf16.mxu0 0
    %628 = vmatpush1.bf16.msra.mxu0 0
    %629 = vmatprep.subr.bf16.mxu0 0
    %630 = vmatpush1.bf16.msra.mxu0 0
    %631 = vmatprep.subr.bf16.mxu0 0
    %632 = vmatpush1.bf16.msra.mxu0 0
    %633 = vmatprep.subr.bf16.mxu0 0
    %634 = vmatpush1.bf16.msra.mxu0 0
    %635 = vmatprep.subr.bf16.mxu0 0
    %636 = vmatpush1.bf16.msra.mxu0 0
    %637 = vmatprep.subr.bf16.mxu0 0
    %638 = vmatpush1.bf16.msra.mxu0 0
    %639 = vmatprep.subr.bf16.mxu0 0
    %640 = vmatpush1.bf16.msra.mxu0 0
    %641 = vmatprep.subr.bf16.mxu0 0
    %642 = vmatpush1.bf16.msra.mxu0 0
    %643 = vmatprep.subr.bf16.mxu0 0
    %644 = vmatpush1.bf16.msra.mxu0 0
    %645 = vmatprep.subr.bf16.mxu0 0
    %646 = vmatpush1.bf16.msra.mxu0 0
    %647 = vmatprep.subr.bf16.mxu0 0
    %648 = vmatpush1.bf16.msra.mxu0 0
    %649 = vmatprep.subr.bf16.mxu0 0
    %650 = vmatpush1.bf16.msra.mxu0 0
    %651 = vmatprep.mubr.bf16.mxu0 0
    %652 = vmatmul.mubr.bf16.gmra.mrb[0].mxu0 %v608
    %v653 = vpop.f32.mrb[0].mxu0
    %v654 = vadd.f32 %v593, %v653
    %v655 = vpop.f32.mrb[0].mxu0
    %v656 = vpop.f32.mrb[0].mxu0
    %v657 = vadd.f32 %v593, %v656
    %v658 = vpop.f32.mrb[0].mxu0
    %659 = vmatprep.mubr.bf16.mxu0 0
    %660 = vmatmul.mubr.bf16.gmra.mrb[0].mxu0 %v611
    %v661 = vpop.f32.mrb[0].mxu0
    %v662 = vadd.f32 %v593, %v661
    %v663 = vpop.f32.mrb[0].mxu0
    %v664 = vpop.f32.mrb[0].mxu0
    %v665 = vadd.f32 %v593, %v664
    %v666 = vpop.f32.mrb[0].mxu0
    %667 = vmatprep.mubr.bf16.mxu0 0
    %668 = vmatmul.mubr.bf16.gmra.mrb[0].mxu0 %v614
    %v669 = vpop.f32.mrb[0].mxu0
    %v670 = vadd.f32 %v593, %v669
    %v671 = vpop.f32.mrb[0].mxu0
    %v672 = vpop.f32.mrb[0].mxu0
    %v673 = vadd.f32 %v593, %v672
    %v674 = vpop.f32.mrb[0].mxu0
    %675 = vmatprep.mubr.bf16.mxu0 0
    %676 = vmatmul.mubr.bf16.gmra.mrb[0].mxu0 %v617
    %v677 = vpop.f32.mrb[0].mxu0
    %v678 = vadd.f32 %v593, %v677
    %v679 = vpop.f32.mrb[0].mxu0
    %v680 = vpop.f32.mrb[0].mxu0
    %v681 = vadd.f32 %v593, %v680
    %v682 = vpop.f32.mrb[0].mxu0
    %683 = vdwg.mxu0
    %684 = vst.msk [vmem:[#allocation2] sm:$0xff] %vm200, %v654
    %685 = vst.msk [vmem:[#allocation2 + $0x8] sm:$0xff] %vm200, %v657
    %686 = vst.msk [vmem:[#allocation2 + $0x10] sm:$0xff] %vm200, %v662
    %687 = vst.msk [vmem:[#allocation2 + $0x18] sm:$0xff] %vm200, %v665
    %688 = vst.msk [vmem:[#allocation2 + $0x20] sm:$0xff] %vm200, %v670
    %689 = vst.msk [vmem:[#allocation2 + $0x28] sm:$0xff] %vm200, %v673
    %690 = vst.msk [vmem:[#allocation2 + $0x30] sm:$0xff] %vm200, %v678
    %691 = vst.msk [vmem:[#allocation2 + $0x38] sm:$0xff] %vm200, %v681
    %s692 = scalar_lea.vmem [#allocation10], 16
    %v693 = vld [vmem:[%s692] sm:$0xf]
    %v694 = vld [vmem:[%s692 + $0x4] sm:$0xf]
    %v695 = vld [vmem:[%s692 + $0x8] sm:$0xf]
    %v696 = vld [vmem:[%s692 + $0xc] sm:$0xf]
    %v697 = vld [vmem:[#allocation2] sm:$0xff]
    %v698 = vtanh.pop %v697
    %v699 = vld [vmem:[#allocation2 + $0x8] sm:$0xff]
    %v700 = vpack.c.bf16 %v698, %v698
    %v705 = vunpack.c.l.b16 %v693
    %v706 = vunpack.c.l.b16 %v694
    %v707 = vunpack.c.l.b16 %v695
    %v708 = vunpack.c.l.b16 %v696
    %v709 = vpack.c.b16 %v706, %v705
    %v710 = vpack.c.b16 %v708, %v707
    %v714 = vsel %vm200, %v700, 0
    %716 = vmatprep.subr.bf16.mxu0 0
    %717 = vmatpush1.bf16.msra.mxu0 %v709
    %718 = vmatprep.subr.bf16.mxu0 0
    %719 = vmatpush1.bf16.msra.mxu0 %v710
    %720 = vmatprep.subr.bf16.mxu0 0
    %721 = vmatpush1.bf16.msra.mxu0 0
    %722 = vmatprep.subr.bf16.mxu0 0
    %723 = vmatpush1.bf16.msra.mxu0 0
    %724 = vmatprep.subr.bf16.mxu0 0
    %725 = vmatpush1.bf16.msra.mxu0 0
    %726 = vmatprep.subr.bf16.mxu0 0
    %727 = vmatpush1.bf16.msra.mxu0 0
    %728 = vmatprep.subr.bf16.mxu0 0
    %729 = vmatpush1.bf16.msra.mxu0 0
    %730 = vmatprep.subr.bf16.mxu0 0
    %731 = vmatpush1.bf16.msra.mxu0 0
    %732 = vmatprep.subr.bf16.mxu0 0
    %733 = vmatpush1.bf16.msra.mxu0 0
    %734 = vmatprep.subr.bf16.mxu0 0
    %735 = vmatpush1.bf16.msra.mxu0 0
    %736 = vmatprep.subr.bf16.mxu0 0
    %737 = vmatpush1.bf16.msra.mxu0 0
    %738 = vmatprep.subr.bf16.mxu0 0
    %739 = vmatpush1.bf16.msra.mxu0 0
    %740 = vmatprep.subr.bf16.mxu0 0
    %741 = vmatpush1.bf16.msra.mxu0 0
    %742 = vmatprep.subr.bf16.mxu0 0
    %743 = vmatpush1.bf16.msra.mxu0 0
    %744 = vmatprep.subr.bf16.mxu0 0
    %745 = vmatpush1.bf16.msra.mxu0 0
    %746 = vmatprep.subr.bf16.mxu0 0
    %747 = vmatpush1.bf16.msra.mxu0 0
    %748 = vmatprep.mubr.bf16.mxu0 0
    %749 = vmatmul.mubr.bf16.gmra.mrb[0].mxu0 %v714
    %v750 = vpop.f32.mrb[0].mxu0
    %v751 = vadd.f32 0.0, %v750
    %v752 = vpop.f32.mrb[0].mxu0
    %v753 = vpop.f32.mrb[0].mxu0
    %v754 = vpop.f32.mrb[0].mxu0
    %755 = vdwg.mxu0
    %v756 = vadd.f32 %v699, %v751
    %v757 = vtanh.pop %v756
    %v758 = vld [vmem:[#allocation2 + $0x10] sm:$0xff]
    %v759 = vpack.c.bf16 %v757, %v757
    %v761 = vsel %vm200, %v759, 0
    %763 = vmatprep.subr.bf16.mxu0 0
    %764 = vmatpush1.bf16.msra.mxu0 %v709
    %765 = vmatprep.subr.bf16.mxu0 0
    %766 = vmatpush1.bf16.msra.mxu0 %v710
    %767 = vmatprep.subr.bf16.mxu0 0
    %768 = vmatpush1.bf16.msra.mxu0 0
    %769 = vmatprep.subr.bf16.mxu0 0
    %770 = vmatpush1.bf16.msra.mxu0 0
    %771 = vmatprep.subr.bf16.mxu0 0
    %772 = vmatpush1.bf16.msra.mxu0 0
    %773 = vmatprep.subr.bf16.mxu0 0
    %774 = vmatpush1.bf16.msra.mxu0 0
    %775 = vmatprep.subr.bf16.mxu0 0
    %776 = vmatpush1.bf16.msra.mxu0 0
    %777 = vmatprep.subr.bf16.mxu0 0
    %778 = vmatpush1.bf16.msra.mxu0 0
    %779 = vmatprep.subr.bf16.mxu0 0
    %780 = vmatpush1.bf16.msra.mxu0 0
    %781 = vmatprep.subr.bf16.mxu0 0
    %782 = vmatpush1.bf16.msra.mxu0 0
    %783 = vmatprep.subr.bf16.mxu0 0
    %784 = vmatpush1.bf16.msra.mxu0 0
    %785 = vmatprep.subr.bf16.mxu0 0
    %786 = vmatpush1.bf16.msra.mxu0 0
    %787 = vmatprep.subr.bf16.mxu0 0
    %788 = vmatpush1.bf16.msra.mxu0 0
    %789 = vmatprep.subr.bf16.mxu0 0
    %790 = vmatpush1.bf16.msra.mxu0 0
    %791 = vmatprep.subr.bf16.mxu0 0
    %792 = vmatpush1.bf16.msra.mxu0 0
    %793 = vmatprep.subr.bf16.mxu0 0
    %794 = vmatpush1.bf16.msra.mxu0 0
    %795 = vmatprep.mubr.bf16.mxu0 0
    %796 = vmatmul.mubr.bf16.gmra.mrb[0].mxu0 %v761
    %v797 = vpop.f32.mrb[0].mxu0
    %v798 = vadd.f32 0.0, %v797
    %v799 = vpop.f32.mrb[0].mxu0
    %v800 = vpop.f32.mrb[0].mxu0
    %v801 = vpop.f32.mrb[0].mxu0
    %802 = vdwg.mxu0
    %v803 = vadd.f32 %v758, %v798
    %v804 = vtanh.pop %v803
    %v805 = vld [vmem:[#allocation2 + $0x18] sm:$0xff]
    %v806 = vpack.c.bf16 %v804, %v804
    %v808 = vsel %vm200, %v806, 0
    %810 = vmatprep.subr.bf16.mxu0 0
    %811 = vmatpush1.bf16.msra.mxu0 %v709
    %812 = vmatprep.subr.bf16.mxu0 0
    %813 = vmatpush1.bf16.msra.mxu0 %v710
    %814 = vmatprep.subr.bf16.mxu0 0
    %815 = vmatpush1.bf16.msra.mxu0 0
    %816 = vmatprep.subr.bf16.mxu0 0
    %817 = vmatpush1.bf16.msra.mxu0 0
    %818 = vmatprep.subr.bf16.mxu0 0
    %819 = vmatpush1.bf16.msra.mxu0 0
    %820 = vmatprep.subr.bf16.mxu0 0
    %821 = vmatpush1.bf16.msra.mxu0 0
    %822 = vmatprep.subr.bf16.mxu0 0
    %823 = vmatpush1.bf16.msra.mxu0 0
    %824 = vmatprep.subr.bf16.mxu0 0
    %825 = vmatpush1.bf16.msra.mxu0 0
    %826 = vmatprep.subr.bf16.mxu0 0
    %827 = vmatpush1.bf16.msra.mxu0 0
    %828 = vmatprep.subr.bf16.mxu0 0
    %829 = vmatpush1.bf16.msra.mxu0 0
    %830 = vmatprep.subr.bf16.mxu0 0
    %831 = vmatpush1.bf16.msra.mxu0 0
    %832 = vmatprep.subr.bf16.mxu0 0
    %833 = vmatpush1.bf16.msra.mxu0 0
    %834 = vmatprep.subr.bf16.mxu0 0
    %835 = vmatpush1.bf16.msra.mxu0 0
    %836 = vmatprep.subr.bf16.mxu0 0
    %837 = vmatpush1.bf16.msra.mxu0 0
    %838 = vmatprep.subr.bf16.mxu0 0
    %839 = vmatpush1.bf16.msra.mxu0 0
    %840 = vmatprep.subr.bf16.mxu0 0
    %841 = vmatpush1.bf16.msra.mxu0 0
    %842 = vmatprep.mubr.bf16.mxu0 0
    %843 = vmatmul.mubr.bf16.gmra.mrb[0].mxu0 %v808
    %v844 = vpop.f32.mrb[0].mxu0
    %v845 = vadd.f32 0.0, %v844
    %v846 = vpop.f32.mrb[0].mxu0
    %v847 = vpop.f32.mrb[0].mxu0
    %v848 = vpop.f32.mrb[0].mxu0
    %849 = vdwg.mxu0
    %v850 = vadd.f32 %v805, %v845
    %v851 = vtanh.pop %v850
    %v852 = vld [vmem:[#allocation2 + $0x20] sm:$0xff]
    %v853 = vpack.c.bf16 %v851, %v851
    %v855 = vsel %vm200, %v853, 0
    %857 = vmatprep.subr.bf16.mxu0 0
    %858 = vmatpush1.bf16.msra.mxu0 %v709
    %859 = vmatprep.subr.bf16.mxu0 0
    %860 = vmatpush1.bf16.msra.mxu0 %v710
    %861 = vmatprep.subr.bf16.mxu0 0
    %862 = vmatpush1.bf16.msra.mxu0 0
    %863 = vmatprep.subr.bf16.mxu0 0
    %864 = vmatpush1.bf16.msra.mxu0 0
    %865 = vmatprep.subr.bf16.mxu0 0
    %866 = vmatpush1.bf16.msra.mxu0 0
    %867 = vmatprep.subr.bf16.mxu0 0
    %868 = vmatpush1.bf16.msra.mxu0 0
    %869 = vmatprep.subr.bf16.mxu0 0
    %870 = vmatpush1.bf16.msra.mxu0 0
    %871 = vmatprep.subr.bf16.mxu0 0
    %872 = vmatpush1.bf16.msra.mxu0 0
    %873 = vmatprep.subr.bf16.mxu0 0
    %874 = vmatpush1.bf16.msra.mxu0 0
    %875 = vmatprep.subr.bf16.mxu0 0
    %876 = vmatpush1.bf16.msra.mxu0 0
    %877 = vmatprep.subr.bf16.mxu0 0
    %878 = vmatpush1.bf16.msra.mxu0 0
    %879 = vmatprep.subr.bf16.mxu0 0
    %880 = vmatpush1.bf16.msra.mxu0 0
    %881 = vmatprep.subr.bf16.mxu0 0
    %882 = vmatpush1.bf16.msra.mxu0 0
    %883 = vmatprep.subr.bf16.mxu0 0
    %884 = vmatpush1.bf16.msra.mxu0 0
    %885 = vmatprep.subr.bf16.mxu0 0
    %886 = vmatpush1.bf16.msra.mxu0 0
    %887 = vmatprep.subr.bf16.mxu0 0
    %888 = vmatpush1.bf16.msra.mxu0 0
    %889 = vmatprep.mubr.bf16.mxu0 0
    %890 = vmatmul.mubr.bf16.gmra.mrb[0].mxu0 %v855
    %v891 = vpop.f32.mrb[0].mxu0
    %v892 = vadd.f32 0.0, %v891
    %v893 = vpop.f32.mrb[0].mxu0
    %v894 = vpop.f32.mrb[0].mxu0
    %v895 = vpop.f32.mrb[0].mxu0
    %896 = vdwg.mxu0
    %v897 = vadd.f32 %v852, %v892
    %v898 = vtanh.pop %v897
    %v899 = vld [vmem:[#allocation2 + $0x28] sm:$0xff]
    %v900 = vpack.c.bf16 %v898, %v898
    %v902 = vsel %vm200, %v900, 0
    %904 = vmatprep.subr.bf16.mxu0 0
    %905 = vmatpush1.bf16.msra.mxu0 %v709
    %906 = vmatprep.subr.bf16.mxu0 0
    %907 = vmatpush1.bf16.msra.mxu0 %v710
    %908 = vmatprep.subr.bf16.mxu0 0
    %909 = vmatpush1.bf16.msra.mxu0 0
    %910 = vmatprep.subr.bf16.mxu0 0
    %911 = vmatpush1.bf16.msra.mxu0 0
    %912 = vmatprep.subr.bf16.mxu0 0
    %913 = vmatpush1.bf16.msra.mxu0 0
    %914 = vmatprep.subr.bf16.mxu0 0
    %915 = vmatpush1.bf16.msra.mxu0 0
    %916 = vmatprep.subr.bf16.mxu0 0
    %917 = vmatpush1.bf16.msra.mxu0 0
    %918 = vmatprep.subr.bf16.mxu0 0
    %919 = vmatpush1.bf16.msra.mxu0 0
    %920 = vmatprep.subr.bf16.mxu0 0
    %921 = vmatpush1.bf16.msra.mxu0 0
    %922 = vmatprep.subr.bf16.mxu0 0
    %923 = vmatpush1.bf16.msra.mxu0 0
    %924 = vmatprep.subr.bf16.mxu0 0
    %925 = vmatpush1.bf16.msra.mxu0 0
    %926 = vmatprep.subr.bf16.mxu0 0
    %927 = vmatpush1.bf16.msra.mxu0 0
    %928 = vmatprep.subr.bf16.mxu0 0
    %929 = vmatpush1.bf16.msra.mxu0 0
    %930 = vmatprep.subr.bf16.mxu0 0
    %931 = vmatpush1.bf16.msra.mxu0 0
    %932 = vmatprep.subr.bf16.mxu0 0
    %933 = vmatpush1.bf16.msra.mxu0 0
    %934 = vmatprep.subr.bf16.mxu0 0
    %935 = vmatpush1.bf16.msra.mxu0 0
    %936 = vmatprep.mubr.bf16.mxu0 0
    %937 = vmatmul.mubr.bf16.gmra.mrb[0].mxu0 %v902
    %v938 = vpop.f32.mrb[0].mxu0
    %v939 = vadd.f32 0.0, %v938
    %v940 = vpop.f32.mrb[0].mxu0
    %v941 = vpop.f32.mrb[0].mxu0
    %v942 = vpop.f32.mrb[0].mxu0
    %943 = vdwg.mxu0
    %v944 = vadd.f32 %v899, %v939
    %v945 = vtanh.pop %v944
    %v946 = vld [vmem:[#allocation2 + $0x30] sm:$0xff]
    %v947 = vpack.c.bf16 %v945, %v945
    %v949 = vsel %vm200, %v947, 0
    %951 = vmatprep.subr.bf16.mxu0 0
    %952 = vmatpush1.bf16.msra.mxu0 %v709
    %953 = vmatprep.subr.bf16.mxu0 0
    %954 = vmatpush1.bf16.msra.mxu0 %v710
    %955 = vmatprep.subr.bf16.mxu0 0
    %956 = vmatpush1.bf16.msra.mxu0 0
    %957 = vmatprep.subr.bf16.mxu0 0
    %958 = vmatpush1.bf16.msra.mxu0 0
    %959 = vmatprep.subr.bf16.mxu0 0
    %960 = vmatpush1.bf16.msra.mxu0 0
    %961 = vmatprep.subr.bf16.mxu0 0
    %962 = vmatpush1.bf16.msra.mxu0 0
    %963 = vmatprep.subr.bf16.mxu0 0
    %964 = vmatpush1.bf16.msra.mxu0 0
    %965 = vmatprep.subr.bf16.mxu0 0
    %966 = vmatpush1.bf16.msra.mxu0 0
    %967 = vmatprep.subr.bf16.mxu0 0
    %968 = vmatpush1.bf16.msra.mxu0 0
    %969 = vmatprep.subr.bf16.mxu0 0
    %970 = vmatpush1.bf16.msra.mxu0 0
    %971 = vmatprep.subr.bf16.mxu0 0
    %972 = vmatpush1.bf16.msra.mxu0 0
    %973 = vmatprep.subr.bf16.mxu0 0
    %974 = vmatpush1.bf16.msra.mxu0 0
    %975 = vmatprep.subr.bf16.mxu0 0
    %976 = vmatpush1.bf16.msra.mxu0 0
    %977 = vmatprep.subr.bf16.mxu0 0
    %978 = vmatpush1.bf16.msra.mxu0 0
    %979 = vmatprep.subr.bf16.mxu0 0
    %980 = vmatpush1.bf16.msra.mxu0 0
    %981 = vmatprep.subr.bf16.mxu0 0
    %982 = vmatpush1.bf16.msra.mxu0 0
    %983 = vmatprep.mubr.bf16.mxu0 0
    %984 = vmatmul.mubr.bf16.gmra.mrb[0].mxu0 %v949
    %v985 = vpop.f32.mrb[0].mxu0
    %v986 = vadd.f32 0.0, %v985
    %v987 = vpop.f32.mrb[0].mxu0
    %v988 = vpop.f32.mrb[0].mxu0
    %v989 = vpop.f32.mrb[0].mxu0
    %990 = vdwg.mxu0
    %v991 = vadd.f32 %v946, %v986
    %v992 = vtanh.pop %v991
    %v993 = vld [vmem:[#allocation2 + $0x38] sm:$0xff]
    %v994 = vpack.c.bf16 %v992, %v992
    %v996 = vsel %vm200, %v994, 0
    %998 = vmatprep.subr.bf16.mxu0 0
    %999 = vmatpush1.bf16.msra.mxu0 %v709
    %1000 = vmatprep.subr.bf16.mxu0 0
    %1001 = vmatpush1.bf16.msra.mxu0 %v710
    %1002 = vmatprep.subr.bf16.mxu0 0
    %1003 = vmatpush1.bf16.msra.mxu0 0
    %1004 = vmatprep.subr.bf16.mxu0 0
    %1005 = vmatpush1.bf16.msra.mxu0 0
    %1006 = vmatprep.subr.bf16.mxu0 0
    %1007 = vmatpush1.bf16.msra.mxu0 0
    %1008 = vmatprep.subr.bf16.mxu0 0
    %1009 = vmatpush1.bf16.msra.mxu0 0
    %1010 = vmatprep.subr.bf16.mxu0 0
    %1011 = vmatpush1.bf16.msra.mxu0 0
    %1012 = vmatprep.subr.bf16.mxu0 0
    %1013 = vmatpush1.bf16.msra.mxu0 0
    %1014 = vmatprep.subr.bf16.mxu0 0
    %1015 = vmatpush1.bf16.msra.mxu0 0
    %1016 = vmatprep.subr.bf16.mxu0 0
    %1017 = vmatpush1.bf16.msra.mxu0 0
    %1018 = vmatprep.subr.bf16.mxu0 0
    %1019 = vmatpush1.bf16.msra.mxu0 0
    %1020 = vmatprep.subr.bf16.mxu0 0
    %1021 = vmatpush1.bf16.msra.mxu0 0
    %1022 = vmatprep.subr.bf16.mxu0 0
    %1023 = vmatpush1.bf16.msra.mxu0 0
    %1024 = vmatprep.subr.bf16.mxu0 0
    %1025 = vmatpush1.bf16.msra.mxu0 0
    %1026 = vmatprep.subr.bf16.mxu0 0
    %1027 = vmatpush1.bf16.msra.mxu0 0
    %1028 = vmatprep.subr.bf16.mxu0 0
    %1029 = vmatpush1.bf16.msra.mxu0 0
    %1030 = vmatprep.mubr.bf16.mxu0 0
    %1031 = vmatmul.mubr.bf16.gmra.mrb[0].mxu0 %v996
    %v1032 = vpop.f32.mrb[0].mxu0
    %v1033 = vadd.f32 0.0, %v1032
    %v1034 = vpop.f32.mrb[0].mxu0
    %v1035 = vpop.f32.mrb[0].mxu0
    %v1036 = vpop.f32.mrb[0].mxu0
    %1037 = vdwg.mxu0
    %v1038 = vadd.f32 %v993, %v1033
    %v1039 = vtanh.pop %v1038
    %1041 = vrot.lane.b32.xlu0 %v1039, 32
    %v1042 = vpop.permute.xlu0 %1041
    %v1044 = vsel %vm200, %v573, %v1042
    %vm1045 = vcmask 523264
    %1046 = vst.msk [vmem:[#allocation16] sm:$0xff] %vm1045, %v1044
    %v1047 = vpack.c.bf16 %v1044, %v1044
    %v1048 = vld [vmem:[#allocation13] sm:$0xf]
    %v1049 = vld [vmem:[#allocation13 + $0x4] sm:$0xf]
    %v1050 = vld [vmem:[#allocation13 + $0x8] sm:$0xf]
    %v1051 = vld [vmem:[#allocation13 + $0xc] sm:$0xf]
    %v1052 = vld [vmem:[#allocation13 + $0x10] sm:$0xf]
    %v1053 = vld [vmem:[#allocation13 + $0x14] sm:$0xf]
    %v1054 = vld [vmem:[#allocation13 + $0x18] sm:$0xf]
    %v1055 = vld [vmem:[#allocation13 + $0x1c] sm:$0xf]
    %v1056 = vld [vmem:[#allocation15] sm:$0x1]
    %v1058 = vlaneseq
    %v1059 = vshrl.u32 %v1058, 7
    %v1060 = vsub.s32 0, %v1059
    %v1061 = vrot.slane %v1056, %v1060
    %v1071 = vunpack.c.l.b16 %v1048
    %v1072 = vunpack.c.l.b16 %v1049
    %v1073 = vunpack.c.l.b16 %v1050
    %v1074 = vunpack.c.l.b16 %v1051
    %v1075 = vunpack.c.l.b16 %v1052
    %v1076 = vunpack.c.l.b16 %v1053
    %v1077 = vunpack.c.l.b16 %v1054
    %v1078 = vunpack.c.l.b16 %v1055
    %v1079 = vpack.c.b16 %v1072, %v1071
    %v1080 = vpack.c.b16 %v1074, %v1073
    %v1081 = vpack.c.b16 %v1076, %v1075
    %v1082 = vpack.c.b16 %v1078, %v1077
    %v1088 = vsel %vm1045, %v1047, 0
    %1090 = vmatprep.subr.bf16.mxu0 0
    %1091 = vmatpush1.bf16.msra.mxu0 %v1079
    %1092 = vmatprep.subr.bf16.mxu0 0
    %1093 = vmatpush1.bf16.msra.mxu0 %v1080
    %1094 = vmatprep.subr.bf16.mxu0 0
    %1095 = vmatpush1.bf16.msra.mxu0 %v1081
    %1096 = vmatprep.subr.bf16.mxu0 0
    %1097 = vmatpush1.bf16.msra.mxu0 %v1082
    %1098 = vmatprep.subr.bf16.mxu0 0
    %1099 = vmatpush1.bf16.msra.mxu0 0
    %1100 = vmatprep.subr.bf16.mxu0 0
    %1101 = vmatpush1.bf16.msra.mxu0 0
    %1102 = vmatprep.subr.bf16.mxu0 0
    %1103 = vmatpush1.bf16.msra.mxu0 0
    %1104 = vmatprep.subr.bf16.mxu0 0
    %1105 = vmatpush1.bf16.msra.mxu0 0
    %1106 = vmatprep.subr.bf16.mxu0 0
    %1107 = vmatpush1.bf16.msra.mxu0 0
    %1108 = vmatprep.subr.bf16.mxu0 0
    %1109 = vmatpush1.bf16.msra.mxu0 0
    %1110 = vmatprep.subr.bf16.mxu0 0
    %1111 = vmatpush1.bf16.msra.mxu0 0
    %1112 = vmatprep.subr.bf16.mxu0 0
    %1113 = vmatpush1.bf16.msra.mxu0 0
    %1114 = vmatprep.subr.bf16.mxu0 0
    %1115 = vmatpush1.bf16.msra.mxu0 0
    %1116 = vmatprep.subr.bf16.mxu0 0
    %1117 = vmatpush1.bf16.msra.mxu0 0
    %1118 = vmatprep.subr.bf16.mxu0 0
    %1119 = vmatpush1.bf16.msra.mxu0 0
    %1120 = vmatprep.subr.bf16.mxu0 0
    %1121 = vmatpush1.bf16.msra.mxu0 0
    %1122 = vmatprep.mubr.bf16.mxu0 0
    %1123 = vmatmul.mubr.bf16.gmra.mrb[0].mxu0 %v1088
    %v1124 = vpop.f32.mrb[0].mxu0
    %v1125 = vadd.f32 %v1061, %v1124
    %v1126 = vpop.f32.mrb[0].mxu0
    %v1127 = vpop.f32.mrb[0].mxu0
    %v1128 = vpop.f32.mrb[0].mxu0
    %1129 = vdwg.mxu0
    %1130 = vst [vmem:[#allocation17] sm:$0xff] %v1125
    // Predicated region
    $region58: #{tpu_custom_call.1} parent=1 // pred_check
      _
    $region59: #{tpu_custom_call.1} parent=1 // pred_check_branch
      %1132 = sbr.rel (0) target = $region61
    $region60: #{tpu_custom_call.1} parent=1 // pred_region
      %s1134 = ssub.s32 128, 128
      %1135 = vsyncadd [#allocation6], %s1134
      %s1137 = sshll.u32 [#allocation16], 4
      %s1138 = int_to_ptr.vmem [resolvable:$true] %s1137
      %1140 = dma.vmem_to_hbm [thread:$0]  %s1138, 128, %s7, [#allocation6]
    $region61: #{tpu_custom_call.1} parent=1 // pred_fallthru
      _
    // Predicated region
    $region62: #{tpu_custom_call.1} parent=1 // pred_check
      _
    $region63: #{tpu_custom_call.1} parent=1 // pred_check_branch
      %1142 = sbr.rel (0) target = $region65
    $region64: #{tpu_custom_call.1} parent=1 // pred_region
      %s1144 = ssub.s32 128, 128
      %1145 = vsyncadd [#allocation18], %s1144
      %s1147 = sshll.u32 [#allocation17], 4
      %s1148 = int_to_ptr.vmem [resolvable:$true] %s1147
      %1150 = dma.vmem_to_hbm [thread:$0]  %s1148, 128, %s8, [#allocation18]
    $region65: #{tpu_custom_call.1} parent=1 // pred_fallthru
      _
    // Predicated region
    $region66: #{tpu_custom_call.1} parent=1 // pred_check
      _
    $region67: #{tpu_custom_call.1} parent=1 // pred_check_branch
      %1152 = sbr.rel (0) target = $region69
    $region68: #{tpu_custom_call.1} parent=1 // pred_region
      %1153 = dma.done [#allocation6], 128
    $region69: #{tpu_custom_call.1} parent=1 // pred_fallthru
      _
    // Predicated region
    $region70: #{tpu_custom_call.1} parent=1 // pred_check
      _
    $region71: #{tpu_custom_call.1} parent=1 // pred_check_branch
      %1155 = sbr.rel (0) target = $region73
    $region72: #{tpu_custom_call.1} parent=1 // pred_region
      %1156 = dma.done [#allocation18], 128
    $region73: #{tpu_custom_call.1} parent=1 // pred_fallthru
      _
    %1157 = vsyncpa [#allocation5], 1
    %1158 = vsyncpa [#allocation8], 1
    %1159 = vsyncpa [#allocation11], 1
    %1160 = vsyncpa [#allocation14], 1
    %1161 = vsyncpa [#allocation6], 1
    %1162 = vsyncpa [#allocation18], 1

</llo_original>
